<compile_context>
chip_gen: v7x
topology: tpu7x:2x2x1
jax: 0.10.0
libtpu: 0.0.40
codegen_flags: <defaults>
</compile_context>

<pallas_src>
import math

import jax
import jax.numpy as jnp
import numpy as np
from jax.experimental import pallas as pl
from jax.experimental.pallas import tpu as pltpu

# ---------------- configuration (toy-sized, consistent with module defaults) --
N_MOD = 2                           # args.n_modalities
D_MODEL = 32
D_STATE = 16
D_CONV = 4
EXPAND = 2
D_INNER = EXPAND * D_MODEL          # 64
DT_RANK = math.ceil(D_MODEL / 16)   # 2
BATCH = 2
SEQLEN = 8

XDBL = DT_RANK + 2 * D_STATE        # 34  (dt | B | C columns of x_proj)

# ------------- packed parameter buffer layout (all offsets static) ------------
P_COLS = N_MOD * 2 * D_INNER                 # 256 lanes
ROW_IN_W = 0                                 # (D_MODEL, N_MOD*2*D_INNER) = (32, 256)
ROW_X_W = ROW_IN_W + D_MODEL                 # N_MOD blocks of (D_INNER, XDBL)
ROW_OUT_W = ROW_X_W + N_MOD * D_INNER        # (D_INNER, N_MOD*D_MODEL) = (64, 64)
ROW_A_LOG = ROW_OUT_W + D_INNER              # (D_STATE, D_INNER) = (16, 64)
ROW_CONV_W = ROW_A_LOG + D_STATE             # (D_CONV, D_INNER) = (4, 64)
ROW_CONV_B = ROW_CONV_W + D_CONV             # (1, D_INNER)
ROW_D = ROW_CONV_B + 1                       # (1, D_INNER)
ROW_DT_W = ROW_D + 1                         # (DT_RANK, N_MOD*D_INNER) = (2, 128)
ROW_DT_B = ROW_DT_W + DT_RANK                # (1, N_MOD*D_INNER)
P_ROWS = 256                                 # >= ROW_DT_B + 1 (=249), multiple of 8
assert P_ROWS >= ROW_DT_B + 1


def _silu(x):
    return x * (1.0 / (1.0 + jnp.exp(-x)))


def _softplus(x):
    return jnp.where(x > 20.0, x, jnp.log(1.0 + jnp.exp(jnp.minimum(x, 20.0))))


# ------------------------------ kernel --------------------------------------
def mom_kernel(hs_ref, mask_ref, p_ref, o_ref, y_sc):
    f32 = jnp.float32
    L = SEQLEN
    hs = hs_ref[0].astype(f32)                      # (L, D_MODEL)
    m = mask_ref[0].astype(f32)                     # (L, N_MOD) one-hot
    mi = [m[:, i:i + 1] for i in range(N_MOD)]      # hoisted mask columns (L, 1)

    # ---- in_proj: one matmul over expert-concatenated weights, then mask-select
    in_wT = p_ref[ROW_IN_W:ROW_IN_W + D_MODEL, :]                  # (32, 256)
    big_xz = jnp.dot(hs, in_wT, preferred_element_type=f32)        # (L, 256)
    xz = mi[0] * big_xz[:, :2 * D_INNER]
    for i in range(1, N_MOD):
        xz = xz + mi[i] * big_xz[:, i * 2 * D_INNER:(i + 1) * 2 * D_INNER]
    x = xz[:, :D_INNER]                                            # (L, 64)
    z = xz[:, D_INNER:]                                            # (L, 64)

    # ---- depthwise causal conv1d (kernel D_CONV, left padding) + SiLU
    conv_wT = p_ref[ROW_CONV_W:ROW_CONV_W + D_CONV, :D_INNER]      # (4, 64)
    conv_b = p_ref[ROW_CONV_B:ROW_CONV_B + 1, :D_INNER]            # (1, 64)
    xpad = jnp.concatenate([jnp.zeros((D_CONV - 1, D_INNER), f32), x], axis=0)
    acc = conv_b
    for k in range(D_CONV):
        acc = acc + xpad[k:k + L, :] * conv_wT[k:k + 1, :]
    u = _silu(acc)                                                 # (L, 64)

    # ---- x_proj: fused (dt | B | C) matmul per modality, mask-merged
    # (no bias -> masking the output equals the reference's gather/scatter)
    x_dbl = jnp.zeros((L, XDBL), f32)
    for i in range(N_MOD):
        w = p_ref[ROW_X_W + i * D_INNER:ROW_X_W + (i + 1) * D_INNER, :XDBL]
        x_dbl = x_dbl + mi[i] * jnp.dot(u, w, preferred_element_type=f32)
    dt_low = x_dbl[:, :DT_RANK]                                    # (L, 2)
    Bm = x_dbl[:, DT_RANK:DT_RANK + D_STATE]                       # (L, 16)
    Cm = x_dbl[:, DT_RANK + D_STATE:XDBL]                          # (L, 16)

    # ---- dt_proj: one matmul over expert-concatenated weights (+ bias), mask-select
    dt_wT = p_ref[ROW_DT_W:ROW_DT_W + DT_RANK, :N_MOD * D_INNER]   # (2, 128)
    dt_b = p_ref[ROW_DT_B:ROW_DT_B + 1, :N_MOD * D_INNER]          # (1, 128)
    big_dt = jnp.dot(dt_low, dt_wT, preferred_element_type=f32) + dt_b
    dtf = mi[0] * big_dt[:, :D_INNER]
    for i in range(1, N_MOD):
        dtf = dtf + mi[i] * big_dt[:, i * D_INNER:(i + 1) * D_INNER]
    delta = _softplus(dtf)                                         # (L, 64)

    # ---- selective scan; state h: (D_STATE, D_INNER)
    A = -jnp.exp(p_ref[ROW_A_LOG:ROW_A_LOG + D_STATE, :D_INNER])   # (16, 64)
    Dv = p_ref[ROW_D:ROW_D + 1, :D_INNER]                          # (1, 64)
    du = delta * u                                                 # (L, 64)
    # All EUP exp() work hoisted out of the serial recurrence (vectorized).
    dA_all = jnp.exp(delta[:, None, :] * A[None, :, :])            # (L, 16, 64)
    BT = jnp.transpose(Bm)                                         # (16, L), one small transpose
    h = jnp.zeros((D_STATE, D_INNER), f32)
    for l in range(L):                                             # static, fully unrolled
        # dBu and y_l depend only on precomputed tensors / fresh h, so they hang
        # off the h->h FMA chain and overlap with neighbouring steps.
        dBu = BT[:, l:l + 1] * du[l:l + 1, :]                      # (16, 64)
        h = dA_all[l] * h + dBu
        y_sc[l:l + 1, :] = jnp.dot(Cm[l:l + 1, :], h,
                                   preferred_element_type=f32)     # MXU (idle during scan)
    y = (y_sc[...] + Dv * u) * _silu(z)                            # (L, 64)

    # ---- out_proj: one matmul over expert-concatenated weights, mask-select
    out_wT = p_ref[ROW_OUT_W:ROW_OUT_W + D_INNER, :N_MOD * D_MODEL]  # (64, 64)
    big_out = jnp.dot(y, out_wT, preferred_element_type=f32)        # (L, 64)
    out = mi[0] * big_out[:, :D_MODEL]
    for i in range(1, N_MOD):
        out = out + mi[i] * big_out[:, i * D_MODEL:(i + 1) * D_MODEL]
    o_ref[0] = out.astype(o_ref.dtype)                              # single slab store


# ------------------------------ wrapper --------------------------------------
def mixture_of_mamba(hidden_states, modality_masks_onehot, packed_params):
    B, L, D = hidden_states.shape
    assert (L, D) == (SEQLEN, D_MODEL)
    grid_spec = pltpu.PrefetchScalarGridSpec(
        num_scalar_prefetch=0,
        grid=(B,),
        in_specs=[
            pl.BlockSpec((1, L, D_MODEL), lambda b: (b, 0, 0)),     # hidden_states
            pl.BlockSpec((1, L, N_MOD), lambda b: (b, 0, 0)),       # one-hot masks
            pl.BlockSpec((P_ROWS, P_COLS), lambda b: (0, 0)),       # packed params
        ],
        out_specs=pl.BlockSpec((1, L, D_MODEL), lambda b: (b, 0, 0)),
        scratch_shapes=[pltpu.VMEM((SEQLEN, D_INNER), jnp.float32)],
    )
    return pl.pallas_call(
        mom_kernel,
        out_shape=jax.ShapeDtypeStruct((B, L, D_MODEL), hidden_states.dtype),
        grid_spec=grid_spec,
        compiler_params=pltpu.CompilerParams(
            dimension_semantics=("parallel",)),
    )(hidden_states, modality_masks_onehot, packed_params)


# --------------------------- parameter packing --------------------------------
def pack_params(raw):
    P = np.zeros((P_ROWS, P_COLS), np.float32)
    in_w = np.asarray(raw["in_w"])          # (N_MOD, 2*D_INNER, D_MODEL)
    x_w = np.asarray(raw["x_w"])            # (N_MOD, XDBL, D_INNER)
    out_w = np.asarray(raw["out_w"])        # (N_MOD, D_MODEL, D_INNER)
    dt_w = np.asarray(raw["dt_w"])          # (N_MOD, D_INNER, DT_RANK)
    dt_b = np.asarray(raw["dt_b"])          # (N_MOD, D_INNER)

    P[ROW_IN_W:ROW_IN_W + D_MODEL, :N_MOD * 2 * D_INNER] = np.concatenate(
        [in_w[i].T for i in range(N_MOD)], axis=1)
    for i in range(N_MOD):
        P[ROW_X_W + i * D_INNER:ROW_X_W + (i + 1) * D_INNER, :XDBL] = x_w[i].T
    P[ROW_OUT_W:ROW_OUT_W + D_INNER, :N_MOD * D_MODEL] = np.concatenate(
        [out_w[i].T for i in range(N_MOD)], axis=1)
    P[ROW_A_LOG:ROW_A_LOG + D_STATE, :D_INNER] = np.asarray(raw["A_log"]).T
    P[ROW_CONV_W:ROW_CONV_W + D_CONV, :D_INNER] = np.asarray(raw["conv_w"]).T
    P[ROW_CONV_B, :D_INNER] = np.asarray(raw["conv_b"]).reshape(-1)
    P[ROW_D, :D_INNER] = np.asarray(raw["D"]).reshape(-1)
    P[ROW_DT_W:ROW_DT_W + DT_RANK, :N_MOD * D_INNER] = np.concatenate(
        [dt_w[i].T for i in range(N_MOD)], axis=1)
    P[ROW_DT_B, :N_MOD * D_INNER] = dt_b.reshape(-1)
    return jnp.asarray(P)


# --------------------------- pure-JAX reference -------------------------------
def reference_forward(hs, masks, raw):
    B, L, _ = hs.shape
    outs = []
    for b in range(B):
        h = hs[b]
        m = masks[b]
        xz = sum(m[:, i:i + 1] * (h @ raw["in_w"][i].T) for i in range(N_MOD))
        x = xz[:, :D_INNER]
        z = xz[:, D_INNER:]
        xpad = jnp.concatenate([jnp.zeros((D_CONV - 1, D_INNER)), x], axis=0)
        conv = raw["conv_b"] + sum(xpad[k:k + L] * raw["conv_w"][:, k][None, :]
                                   for k in range(D_CONV))
        u = conv * jax.nn.sigmoid(conv)
        x_dbl = sum(m[:, i:i + 1] * (u @ raw["x_w"][i].T) for i in range(N_MOD))
        dtl = x_dbl[:, :DT_RANK]
        Bm = x_dbl[:, DT_RANK:DT_RANK + D_STATE]
        Cm = x_dbl[:, DT_RANK + D_STATE:]
        dtf = sum(m[:, i:i + 1] * (dtl @ raw["dt_w"][i].T + raw["dt_b"][i][None, :])
                  for i in range(N_MOD))
        delta = jax.nn.softplus(dtf)
        A = -jnp.exp(raw["A_log"])              # (D_INNER, D_STATE)
        hstate = jnp.zeros((D_INNER, D_STATE))
        ys = []
        for l in range(L):
            dA = jnp.exp(delta[l][:, None] * A)
            dBu = delta[l][:, None] * Bm[l][None, :] * u[l][:, None]
            hstate = dA * hstate + dBu
            ys.append((hstate * Cm[l][None, :]).sum(-1))
        y = jnp.stack(ys, axis=0) + raw["D"] * u
        y = y * (z * jax.nn.sigmoid(z))
        out = sum(m[:, i:i + 1] * (y @ raw["out_w"][i].T) for i in range(N_MOD))
        outs.append(out)
    return jnp.stack(outs, axis=0)


# --------------------------- param init (deterministic) -----------------------
def init_params(key):
    ks = jax.random.split(key, 8)

    def uni(k, shape, scale):
        return jax.random.uniform(k, shape, jnp.float32, -scale, scale)

    in_w = uni(ks[0], (N_MOD, 2 * D_INNER, D_MODEL), 1.0 / math.sqrt(D_MODEL))
    conv_w = uni(ks[1], (D_INNER, D_CONV), 1.0 / math.sqrt(D_CONV))
    conv_b = uni(ks[2], (1, D_INNER), 1.0 / math.sqrt(D_CONV))
    x_w = uni(ks[3], (N_MOD, XDBL, D_INNER), 1.0 / math.sqrt(D_INNER))
    dt_init_std = DT_RANK ** -0.5
    dt_w = uni(ks[4], (N_MOD, D_INNER, DT_RANK), dt_init_std)
    # dt_proj bias init as in the PyTorch module
    dt_min, dt_max, dt_init_floor = 0.001, 0.1, 1e-4
    rnd = jax.random.uniform(ks[5], (N_MOD, D_INNER), jnp.float32)
    dt = jnp.exp(rnd * (math.log(dt_max) - math.log(dt_min)) + math.log(dt_min))
    dt = jnp.maximum(dt, dt_init_floor)
    dt_b = dt + jnp.log(-jnp.expm1(-dt))                  # inverse softplus
    A = jnp.tile(jnp.arange(1, D_STATE + 1, dtype=jnp.float32)[None, :],
                 (D_INNER, 1))                            # (D_INNER, D_STATE)
    A_log = jnp.log(A)
    Dp = jnp.ones((1, D_INNER), jnp.float32)
    out_w = uni(ks[6], (N_MOD, D_MODEL, D_INNER), 1.0 / math.sqrt(D_INNER))

    return dict(in_w=in_w, conv_w=conv_w, conv_b=conv_b, x_w=x_w,
                dt_w=dt_w, dt_b=dt_b, A_log=A_log, D=Dp, out_w=out_w)


if __name__ == "__main__":
    key = jax.random.PRNGKey(0)
    k_p, k_x, k_m = jax.random.split(key, 3)
    raw = init_params(k_p)
    packed = pack_params(raw)

    hidden_states = jax.random.normal(k_x, (BATCH, SEQLEN, D_MODEL), jnp.float32)
    modality_ids = jax.random.randint(k_m, (BATCH, SEQLEN), 0, N_MOD)
    # Masks must be exactly one-hot per token (matches the PyTorch gather/scatter).
    modality_masks = jax.nn.one_hot(modality_ids, N_MOD, dtype=jnp.float32)

    out = jax.block_until_ready(
        mixture_of_mamba(hidden_states, modality_masks, packed))
    ref = jax.block_until_ready(
        reference_forward(hidden_states, modality_masks, raw))
    np.testing.assert_allclose(np.asarray(out), np.asarray(ref),
                               rtol=1e-3, atol=1e-3)
    print("KERNEL_OK")
</pallas_src>

<mosaic_0001>
module attributes {stable_mosaic.version = 11 : i64} {
  func.func @mom_kernel(%arg0: i32, %arg1: memref<1x8x32xf32, #tpu.memory_space<vmem>>, %arg2: memref<1x8x2xf32, #tpu.memory_space<vmem>>, %arg3: memref<256x256xf32, #tpu.memory_space<vmem>>, %arg4: memref<1x8x32xf32, #tpu.memory_space<vmem>>, %arg5: memref<8x64xf32, #tpu.memory_space<vmem>>) attributes {dimension_semantics = [#tpu.dimension_semantics<parallel>], iteration_bounds = array<i64: 2>, scalar_prefetch = 0 : i64, scratch_operands = 1 : i64, tpu.core_type = #tpu.core_type<tc>, window_params = [{transform_indices = @transform_0, window_bounds = array<i64: 1, 8, 32>}, {transform_indices = @transform_1, window_bounds = array<i64: 1, 8, 2>}, {pipeline_mode = #tpu.pipeline_mode<synchronous>, transform_indices = @transform_2, window_bounds = array<i64: 256, 256>}, {transform_indices = @transform_3, window_bounds = array<i64: 1, 8, 32>}]} {
    %c0 = arith.constant 0 : index
    %c0_0 = arith.constant 0 : index
    %c0_1 = arith.constant 0 : index
    %0 = vector.load %arg1[%c0, %c0_0, %c0_1] : memref<1x8x32xf32, #tpu.memory_space<vmem>>, vector<1x8x32xf32>
    %1 = vector.shape_cast %0 : vector<1x8x32xf32> to vector<8x32xf32>
    %c0_2 = arith.constant 0 : index
    %c0_3 = arith.constant 0 : index
    %c0_4 = arith.constant 0 : index
    %2 = vector.load %arg2[%c0_2, %c0_3, %c0_4] : memref<1x8x2xf32, #tpu.memory_space<vmem>>, vector<1x8x2xf32>
    %3 = vector.shape_cast %2 : vector<1x8x2xf32> to vector<8x2xf32>
    %4 = vector.extract_strided_slice %3 {offsets = [0, 0], sizes = [8, 1], strides = [1, 1]} : vector<8x2xf32> to vector<8x1xf32>
    %5 = vector.extract_strided_slice %3 {offsets = [0, 1], sizes = [8, 1], strides = [1, 1]} : vector<8x2xf32> to vector<8x1xf32>
    %c0_5 = arith.constant 0 : index
    %c0_6 = arith.constant 0 : index
    %6 = vector.load %arg3[%c0_5, %c0_6] : memref<256x256xf32, #tpu.memory_space<vmem>>, vector<32x256xf32>
    %cst = arith.constant dense<0.000000e+00> : vector<8x256xf32>
    %7 = tpu.matmul %1, %6, %cst {dimension_numbers = #tpu.dot_dimension_numbers<[1], [0], [0], [1], [0, 0, 1, 1], [], []>} : vector<8x32xf32>, vector<32x256xf32>, vector<8x256xf32> -> vector<8x256xf32>
    %8 = vector.extract_strided_slice %7 {offsets = [0, 0], sizes = [8, 128], strides = [1, 1]} : vector<8x256xf32> to vector<8x128xf32>
    %9 = vector.broadcast %4 : vector<8x1xf32> to vector<8x128xf32>
    %10 = arith.mulf %9, %8 : vector<8x128xf32>
    %11 = vector.extract_strided_slice %7 {offsets = [0, 128], sizes = [8, 128], strides = [1, 1]} : vector<8x256xf32> to vector<8x128xf32>
    %12 = vector.broadcast %5 : vector<8x1xf32> to vector<8x128xf32>
    %13 = arith.mulf %12, %11 : vector<8x128xf32>
    %14 = arith.addf %10, %13 : vector<8x128xf32>
    %15 = vector.extract_strided_slice %14 {offsets = [0, 0], sizes = [8, 64], strides = [1, 1]} : vector<8x128xf32> to vector<8x64xf32>
    %16 = vector.extract_strided_slice %14 {offsets = [0, 64], sizes = [8, 64], strides = [1, 1]} : vector<8x128xf32> to vector<8x64xf32>
    %c240 = arith.constant 240 : index
    %c0_7 = arith.constant 0 : index
    %17 = vector.load %arg3[%c240, %c0_7] : memref<256x256xf32, #tpu.memory_space<vmem>>, vector<4x64xf32>
    %c244 = arith.constant 244 : index
    %c0_8 = arith.constant 0 : index
    %18 = vector.load %arg3[%c244, %c0_8] : memref<256x256xf32, #tpu.memory_space<vmem>>, vector<1x64xf32>
    %cst_9 = arith.constant 0.000000e+00 : f32
    %19 = vector.broadcast %cst_9 : f32 to vector<3x64xf32>
    %20 = tpu.concatenate %19, %15 in 0 : vector<3x64xf32>, vector<8x64xf32> -> vector<11x64xf32>
    %21 = vector.extract_strided_slice %20 {offsets = [0, 0], sizes = [8, 64], strides = [1, 1]} : vector<11x64xf32> to vector<8x64xf32>
    %22 = vector.extract_strided_slice %17 {offsets = [0, 0], sizes = [1, 64], strides = [1, 1]} : vector<4x64xf32> to vector<1x64xf32>
    %23 = vector.broadcast %22 : vector<1x64xf32> to vector<8x64xf32>
    %24 = arith.mulf %21, %23 : vector<8x64xf32>
    %25 = vector.broadcast %18 : vector<1x64xf32> to vector<8x64xf32>
    %26 = arith.addf %25, %24 : vector<8x64xf32>
    %27 = vector.extract_strided_slice %20 {offsets = [1, 0], sizes = [8, 64], strides = [1, 1]} : vector<11x64xf32> to vector<8x64xf32>
    %28 = vector.extract_strided_slice %17 {offsets = [1, 0], sizes = [1, 64], strides = [1, 1]} : vector<4x64xf32> to vector<1x64xf32>
    %29 = vector.broadcast %28 : vector<1x64xf32> to vector<8x64xf32>
    %30 = arith.mulf %27, %29 : vector<8x64xf32>
    %31 = arith.addf %26, %30 : vector<8x64xf32>
    %32 = vector.extract_strided_slice %20 {offsets = [2, 0], sizes = [8, 64], strides = [1, 1]} : vector<11x64xf32> to vector<8x64xf32>
    %33 = vector.extract_strided_slice %17 {offsets = [2, 0], sizes = [1, 64], strides = [1, 1]} : vector<4x64xf32> to vector<1x64xf32>
    %34 = vector.broadcast %33 : vector<1x64xf32> to vector<8x64xf32>
    %35 = arith.mulf %32, %34 : vector<8x64xf32>
    %36 = arith.addf %31, %35 : vector<8x64xf32>
    %37 = vector.extract_strided_slice %20 {offsets = [3, 0], sizes = [8, 64], strides = [1, 1]} : vector<11x64xf32> to vector<8x64xf32>
    %38 = vector.extract_strided_slice %17 {offsets = [3, 0], sizes = [1, 64], strides = [1, 1]} : vector<4x64xf32> to vector<1x64xf32>
    %39 = vector.broadcast %38 : vector<1x64xf32> to vector<8x64xf32>
    %40 = arith.mulf %37, %39 : vector<8x64xf32>
    %41 = arith.addf %36, %40 : vector<8x64xf32>
    %cst_10 = arith.constant 0.000000e+00 : f32
    %42 = vector.broadcast %cst_10 : f32 to vector<8x64xf32>
    %43 = arith.subf %42, %41 : vector<8x64xf32>
    %44 = math.exp %43 : vector<8x64xf32>
    %cst_11 = arith.constant 1.000000e+00 : f32
    %45 = vector.broadcast %cst_11 : f32 to vector<8x64xf32>
    %46 = arith.addf %45, %44 : vector<8x64xf32>
    %cst_12 = arith.constant 1.000000e+00 : f32
    %47 = vector.broadcast %cst_12 : f32 to vector<8x64xf32>
    %48 = arith.divf %47, %46 : vector<8x64xf32>
    %49 = arith.mulf %41, %48 : vector<8x64xf32>
    %cst_13 = arith.constant 0.000000e+00 : f32
    %50 = vector.broadcast %cst_13 : f32 to vector<8x34xf32>
    %c32 = arith.constant 32 : index
    %c0_14 = arith.constant 0 : index
    %51 = vector.load %arg3[%c32, %c0_14] : memref<256x256xf32, #tpu.memory_space<vmem>>, vector<64x34xf32>
    %cst_15 = arith.constant dense<0.000000e+00> : vector<8x34xf32>
    %52 = tpu.matmul %49, %51, %cst_15 {dimension_numbers = #tpu.dot_dimension_numbers<[1], [0], [0], [1], [0, 0, 1, 1], [], []>} : vector<8x64xf32>, vector<64x34xf32>, vector<8x34xf32> -> vector<8x34xf32>
    %53 = vector.broadcast %4 : vector<8x1xf32> to vector<8x34xf32>
    %54 = arith.mulf %53, %52 : vector<8x34xf32>
    %55 = arith.addf %50, %54 : vector<8x34xf32>
    %c96 = arith.constant 96 : index
    %c0_16 = arith.constant 0 : index
    %56 = vector.load %arg3[%c96, %c0_16] : memref<256x256xf32, #tpu.memory_space<vmem>>, vector<64x34xf32>
    %cst_17 = arith.constant dense<0.000000e+00> : vector<8x34xf32>
    %57 = tpu.matmul %49, %56, %cst_17 {dimension_numbers = #tpu.dot_dimension_numbers<[1], [0], [0], [1], [0, 0, 1, 1], [], []>} : vector<8x64xf32>, vector<64x34xf32>, vector<8x34xf32> -> vector<8x34xf32>
    %58 = vector.broadcast %5 : vector<8x1xf32> to vector<8x34xf32>
    %59 = arith.mulf %58, %57 : vector<8x34xf32>
    %60 = arith.addf %55, %59 : vector<8x34xf32>
    %61 = vector.extract_strided_slice %60 {offsets = [0, 0], sizes = [8, 2], strides = [1, 1]} : vector<8x34xf32> to vector<8x2xf32>
    %62 = vector.extract_strided_slice %60 {offsets = [0, 2], sizes = [8, 16], strides = [1, 1]} : vector<8x34xf32> to vector<8x16xf32>
    %63 = vector.extract_strided_slice %60 {offsets = [0, 18], sizes = [8, 16], strides = [1, 1]} : vector<8x34xf32> to vector<8x16xf32>
    %c246 = arith.constant 246 : index
    %c0_18 = arith.constant 0 : index
    %64 = vector.load %arg3[%c246, %c0_18] : memref<256x256xf32, #tpu.memory_space<vmem>>, vector<2x128xf32>
    %c248 = arith.constant 248 : index
    %c0_19 = arith.constant 0 : index
    %65 = vector.load %arg3[%c248, %c0_19] : memref<256x256xf32, #tpu.memory_space<vmem>>, vector<1x128xf32>
    %cst_20 = arith.constant dense<0.000000e+00> : vector<8x128xf32>
    %66 = tpu.matmul %61, %64, %cst_20 {dimension_numbers = #tpu.dot_dimension_numbers<[1], [0], [0], [1], [0, 0, 1, 1], [], []>} : vector<8x2xf32>, vector<2x128xf32>, vector<8x128xf32> -> vector<8x128xf32>
    %67 = vector.broadcast %65 : vector<1x128xf32> to vector<8x128xf32>
    %68 = arith.addf %66, %67 : vector<8x128xf32>
    %69 = vector.extract_strided_slice %68 {offsets = [0, 0], sizes = [8, 64], strides = [1, 1]} : vector<8x128xf32> to vector<8x64xf32>
    %70 = vector.broadcast %4 : vector<8x1xf32> to vector<8x64xf32>
    %71 = arith.mulf %70, %69 : vector<8x64xf32>
    %72 = vector.extract_strided_slice %68 {offsets = [0, 64], sizes = [8, 64], strides = [1, 1]} : vector<8x128xf32> to vector<8x64xf32>
    %73 = vector.broadcast %5 : vector<8x1xf32> to vector<8x64xf32>
    %74 = arith.mulf %73, %72 : vector<8x64xf32>
    %75 = arith.addf %71, %74 : vector<8x64xf32>
    %cst_21 = arith.constant 2.000000e+01 : f32
    %76 = vector.broadcast %cst_21 : f32 to vector<8x64xf32>
    %77 = arith.cmpf ogt, %75, %76 : vector<8x64xf32>
    %cst_22 = arith.constant 2.000000e+01 : f32
    %78 = vector.broadcast %cst_22 : f32 to vector<8x64xf32>
    %79 = arith.minimumf %75, %78 : vector<8x64xf32>
    %80 = math.exp %79 : vector<8x64xf32>
    %cst_23 = arith.constant 1.000000e+00 : f32
    %81 = vector.broadcast %cst_23 : f32 to vector<8x64xf32>
    %82 = arith.addf %81, %80 : vector<8x64xf32>
    %83 = math.log %82 : vector<8x64xf32>
    %84 = arith.select %77, %75, %83 : vector<8x64xi1>, vector<8x64xf32>
    %c224 = arith.constant 224 : index
    %c0_24 = arith.constant 0 : index
    %85 = vector.load %arg3[%c224, %c0_24] : memref<256x256xf32, #tpu.memory_space<vmem>>, vector<16x64xf32>
    %86 = math.exp %85 : vector<16x64xf32>
    %cst_25 = arith.constant 0.000000e+00 : f32
    %87 = vector.broadcast %cst_25 : f32 to vector<16x64xf32>
    %88 = arith.subf %87, %86 : vector<16x64xf32>
    %c245 = arith.constant 245 : index
    %c0_26 = arith.constant 0 : index
    %89 = vector.load %arg3[%c245, %c0_26] : memref<256x256xf32, #tpu.memory_space<vmem>>, vector<1x64xf32>
    %90 = arith.mulf %84, %49 : vector<8x64xf32>
    %91 = vector.shape_cast %84 : vector<8x64xf32> to vector<8x1x64xf32>
    %92 = vector.shape_cast %88 : vector<16x64xf32> to vector<1x16x64xf32>
    %93 = vector.broadcast %91 : vector<8x1x64xf32> to vector<8x16x64xf32>
    %94 = vector.broadcast %92 : vector<1x16x64xf32> to vector<8x16x64xf32>
    %95 = arith.mulf %93, %94 : vector<8x16x64xf32>
    %96 = math.exp %95 : vector<8x16x64xf32>
    %97 = tpu.transpose %62, [1, 0] : vector<8x16xf32> -> vector<16x8xf32>
    %cst_27 = arith.constant 0.000000e+00 : f32
    %98 = vector.broadcast %cst_27 : f32 to vector<16x64xf32>
    %99 = vector.extract_strided_slice %97 {offsets = [0, 0], sizes = [16, 1], strides = [1, 1]} : vector<16x8xf32> to vector<16x1xf32>
    %100 = vector.extract_strided_slice %90 {offsets = [0, 0], sizes = [1, 64], strides = [1, 1]} : vector<8x64xf32> to vector<1x64xf32>
    %101 = vector.broadcast %99 : vector<16x1xf32> to vector<16x64xf32>
    %102 = vector.broadcast %100 : vector<1x64xf32> to vector<16x64xf32>
    %103 = arith.mulf %101, %102 : vector<16x64xf32>
    %104 = vector.extract_strided_slice %96 {offsets = [0, 0, 0], sizes = [1, 16, 64], strides = [1, 1, 1]} : vector<8x16x64xf32> to vector<1x16x64xf32>
    %105 = vector.shape_cast %104 : vector<1x16x64xf32> to vector<16x64xf32>
    %106 = arith.mulf %105, %98 : vector<16x64xf32>
    %107 = arith.addf %106, %103 : vector<16x64xf32>
    %108 = vector.extract_strided_slice %63 {offsets = [0, 0], sizes = [1, 16], strides = [1, 1]} : vector<8x16xf32> to vector<1x16xf32>
    %cst_28 = arith.constant dense<0.000000e+00> : vector<1x64xf32>
    %109 = tpu.matmul %108, %107, %cst_28 {dimension_numbers = #tpu.dot_dimension_numbers<[1], [0], [0], [1], [0, 0, 1, 1], [], []>} : vector<1x16xf32>, vector<16x64xf32>, vector<1x64xf32> -> vector<1x64xf32>
    %c0_29 = arith.constant 0 : index
    %c0_30 = arith.constant 0 : index
    %110 = vector.load %arg5[%c0_29, %c0_30] : memref<8x64xf32, #tpu.memory_space<vmem>>, vector<1x64xf32>
    tpu.vector_store %arg5[%c0_29, %c0_30], %109 {strides = array<i32>} : memref<8x64xf32, #tpu.memory_space<vmem>>, vector<1x64xf32>,
    %111 = vector.extract_strided_slice %97 {offsets = [0, 1], sizes = [16, 1], strides = [1, 1]} : vector<16x8xf32> to vector<16x1xf32>
    %112 = vector.extract_strided_slice %90 {offsets = [1, 0], sizes = [1, 64], strides = [1, 1]} : vector<8x64xf32> to vector<1x64xf32>
    %113 = vector.broadcast %111 : vector<16x1xf32> to vector<16x64xf32>
    %114 = vector.broadcast %112 : vector<1x64xf32> to vector<16x64xf32>
    %115 = arith.mulf %113, %114 : vector<16x64xf32>
    %116 = vector.extract_strided_slice %96 {offsets = [1, 0, 0], sizes = [1, 16, 64], strides = [1, 1, 1]} : vector<8x16x64xf32> to vector<1x16x64xf32>
    %117 = vector.shape_cast %116 : vector<1x16x64xf32> to vector<16x64xf32>
    %118 = arith.mulf %117, %107 : vector<16x64xf32>
    %119 = arith.addf %118, %115 : vector<16x64xf32>
    %120 = vector.extract_strided_slice %63 {offsets = [1, 0], sizes = [1, 16], strides = [1, 1]} : vector<8x16xf32> to vector<1x16xf32>
    %cst_31 = arith.constant dense<0.000000e+00> : vector<1x64xf32>
    %121 = tpu.matmul %120, %119, %cst_31 {dimension_numbers = #tpu.dot_dimension_numbers<[1], [0], [0], [1], [0, 0, 1, 1], [], []>} : vector<1x16xf32>, vector<16x64xf32>, vector<1x64xf32> -> vector<1x64xf32>
    %c1 = arith.constant 1 : index
    %c0_32 = arith.constant 0 : index
    %122 = vector.load %arg5[%c1, %c0_32] : memref<8x64xf32, #tpu.memory_space<vmem>>, vector<1x64xf32>
    tpu.vector_store %arg5[%c1, %c0_32], %121 {strides = array<i32>} : memref<8x64xf32, #tpu.memory_space<vmem>>, vector<1x64xf32>,
    %123 = vector.extract_strided_slice %97 {offsets = [0, 2], sizes = [16, 1], strides = [1, 1]} : vector<16x8xf32> to vector<16x1xf32>
    %124 = vector.extract_strided_slice %90 {offsets = [2, 0], sizes = [1, 64], strides = [1, 1]} : vector<8x64xf32> to vector<1x64xf32>
    %125 = vector.broadcast %123 : vector<16x1xf32> to vector<16x64xf32>
    %126 = vector.broadcast %124 : vector<1x64xf32> to vector<16x64xf32>
    %127 = arith.mulf %125, %126 : vector<16x64xf32>
    %128 = vector.extract_strided_slice %96 {offsets = [2, 0, 0], sizes = [1, 16, 64], strides = [1, 1, 1]} : vector<8x16x64xf32> to vector<1x16x64xf32>
    %129 = vector.shape_cast %128 : vector<1x16x64xf32> to vector<16x64xf32>
    %130 = arith.mulf %129, %119 : vector<16x64xf32>
    %131 = arith.addf %130, %127 : vector<16x64xf32>
    %132 = vector.extract_strided_slice %63 {offsets = [2, 0], sizes = [1, 16], strides = [1, 1]} : vector<8x16xf32> to vector<1x16xf32>
    %cst_33 = arith.constant dense<0.000000e+00> : vector<1x64xf32>
    %133 = tpu.matmul %132, %131, %cst_33 {dimension_numbers = #tpu.dot_dimension_numbers<[1], [0], [0], [1], [0, 0, 1, 1], [], []>} : vector<1x16xf32>, vector<16x64xf32>, vector<1x64xf32> -> vector<1x64xf32>
    %c2 = arith.constant 2 : index
    %c0_34 = arith.constant 0 : index
    %134 = vector.load %arg5[%c2, %c0_34] : memref<8x64xf32, #tpu.memory_space<vmem>>, vector<1x64xf32>
    tpu.vector_store %arg5[%c2, %c0_34], %133 {strides = array<i32>} : memref<8x64xf32, #tpu.memory_space<vmem>>, vector<1x64xf32>,
    %135 = vector.extract_strided_slice %97 {offsets = [0, 3], sizes = [16, 1], strides = [1, 1]} : vector<16x8xf32> to vector<16x1xf32>
    %136 = vector.extract_strided_slice %90 {offsets = [3, 0], sizes = [1, 64], strides = [1, 1]} : vector<8x64xf32> to vector<1x64xf32>
    %137 = vector.broadcast %135 : vector<16x1xf32> to vector<16x64xf32>
    %138 = vector.broadcast %136 : vector<1x64xf32> to vector<16x64xf32>
    %139 = arith.mulf %137, %138 : vector<16x64xf32>
    %140 = vector.extract_strided_slice %96 {offsets = [3, 0, 0], sizes = [1, 16, 64], strides = [1, 1, 1]} : vector<8x16x64xf32> to vector<1x16x64xf32>
    %141 = vector.shape_cast %140 : vector<1x16x64xf32> to vector<16x64xf32>
    %142 = arith.mulf %141, %131 : vector<16x64xf32>
    %143 = arith.addf %142, %139 : vector<16x64xf32>
    %144 = vector.extract_strided_slice %63 {offsets = [3, 0], sizes = [1, 16], strides = [1, 1]} : vector<8x16xf32> to vector<1x16xf32>
    %cst_35 = arith.constant dense<0.000000e+00> : vector<1x64xf32>
    %145 = tpu.matmul %144, %143, %cst_35 {dimension_numbers = #tpu.dot_dimension_numbers<[1], [0], [0], [1], [0, 0, 1, 1], [], []>} : vector<1x16xf32>, vector<16x64xf32>, vector<1x64xf32> -> vector<1x64xf32>
    %c3 = arith.constant 3 : index
    %c0_36 = arith.constant 0 : index
    %146 = vector.load %arg5[%c3, %c0_36] : memref<8x64xf32, #tpu.memory_space<vmem>>, vector<1x64xf32>
    tpu.vector_store %arg5[%c3, %c0_36], %145 {strides = array<i32>} : memref<8x64xf32, #tpu.memory_space<vmem>>, vector<1x64xf32>,
    %147 = vector.extract_strided_slice %97 {offsets = [0, 4], sizes = [16, 1], strides = [1, 1]} : vector<16x8xf32> to vector<16x1xf32>
    %148 = vector.extract_strided_slice %90 {offsets = [4, 0], sizes = [1, 64], strides = [1, 1]} : vector<8x64xf32> to vector<1x64xf32>
    %149 = vector.broadcast %147 : vector<16x1xf32> to vector<16x64xf32>
    %150 = vector.broadcast %148 : vector<1x64xf32> to vector<16x64xf32>
    %151 = arith.mulf %149, %150 : vector<16x64xf32>
    %152 = vector.extract_strided_slice %96 {offsets = [4, 0, 0], sizes = [1, 16, 64], strides = [1, 1, 1]} : vector<8x16x64xf32> to vector<1x16x64xf32>
    %153 = vector.shape_cast %152 : vector<1x16x64xf32> to vector<16x64xf32>
    %154 = arith.mulf %153, %143 : vector<16x64xf32>
    %155 = arith.addf %154, %151 : vector<16x64xf32>
    %156 = vector.extract_strided_slice %63 {offsets = [4, 0], sizes = [1, 16], strides = [1, 1]} : vector<8x16xf32> to vector<1x16xf32>
    %cst_37 = arith.constant dense<0.000000e+00> : vector<1x64xf32>
    %157 = tpu.matmul %156, %155, %cst_37 {dimension_numbers = #tpu.dot_dimension_numbers<[1], [0], [0], [1], [0, 0, 1, 1], [], []>} : vector<1x16xf32>, vector<16x64xf32>, vector<1x64xf32> -> vector<1x64xf32>
    %c4 = arith.constant 4 : index
    %c0_38 = arith.constant 0 : index
    %158 = vector.load %arg5[%c4, %c0_38] : memref<8x64xf32, #tpu.memory_space<vmem>>, vector<1x64xf32>
    tpu.vector_store %arg5[%c4, %c0_38], %157 {strides = array<i32>} : memref<8x64xf32, #tpu.memory_space<vmem>>, vector<1x64xf32>,
    %159 = vector.extract_strided_slice %97 {offsets = [0, 5], sizes = [16, 1], strides = [1, 1]} : vector<16x8xf32> to vector<16x1xf32>
    %160 = vector.extract_strided_slice %90 {offsets = [5, 0], sizes = [1, 64], strides = [1, 1]} : vector<8x64xf32> to vector<1x64xf32>
    %161 = vector.broadcast %159 : vector<16x1xf32> to vector<16x64xf32>
    %162 = vector.broadcast %160 : vector<1x64xf32> to vector<16x64xf32>
    %163 = arith.mulf %161, %162 : vector<16x64xf32>
    %164 = vector.extract_strided_slice %96 {offsets = [5, 0, 0], sizes = [1, 16, 64], strides = [1, 1, 1]} : vector<8x16x64xf32> to vector<1x16x64xf32>
    %165 = vector.shape_cast %164 : vector<1x16x64xf32> to vector<16x64xf32>
    %166 = arith.mulf %165, %155 : vector<16x64xf32>
    %167 = arith.addf %166, %163 : vector<16x64xf32>
    %168 = vector.extract_strided_slice %63 {offsets = [5, 0], sizes = [1, 16], strides = [1, 1]} : vector<8x16xf32> to vector<1x16xf32>
    %cst_39 = arith.constant dense<0.000000e+00> : vector<1x64xf32>
    %169 = tpu.matmul %168, %167, %cst_39 {dimension_numbers = #tpu.dot_dimension_numbers<[1], [0], [0], [1], [0, 0, 1, 1], [], []>} : vector<1x16xf32>, vector<16x64xf32>, vector<1x64xf32> -> vector<1x64xf32>
    %c5 = arith.constant 5 : index
    %c0_40 = arith.constant 0 : index
    %170 = vector.load %arg5[%c5, %c0_40] : memref<8x64xf32, #tpu.memory_space<vmem>>, vector<1x64xf32>
    tpu.vector_store %arg5[%c5, %c0_40], %169 {strides = array<i32>} : memref<8x64xf32, #tpu.memory_space<vmem>>, vector<1x64xf32>,
    %171 = vector.extract_strided_slice %97 {offsets = [0, 6], sizes = [16, 1], strides = [1, 1]} : vector<16x8xf32> to vector<16x1xf32>
    %172 = vector.extract_strided_slice %90 {offsets = [6, 0], sizes = [1, 64], strides = [1, 1]} : vector<8x64xf32> to vector<1x64xf32>
    %173 = vector.broadcast %171 : vector<16x1xf32> to vector<16x64xf32>
    %174 = vector.broadcast %172 : vector<1x64xf32> to vector<16x64xf32>
    %175 = arith.mulf %173, %174 : vector<16x64xf32>
    %176 = vector.extract_strided_slice %96 {offsets = [6, 0, 0], sizes = [1, 16, 64], strides = [1, 1, 1]} : vector<8x16x64xf32> to vector<1x16x64xf32>
    %177 = vector.shape_cast %176 : vector<1x16x64xf32> to vector<16x64xf32>
    %178 = arith.mulf %177, %167 : vector<16x64xf32>
    %179 = arith.addf %178, %175 : vector<16x64xf32>
    %180 = vector.extract_strided_slice %63 {offsets = [6, 0], sizes = [1, 16], strides = [1, 1]} : vector<8x16xf32> to vector<1x16xf32>
    %cst_41 = arith.constant dense<0.000000e+00> : vector<1x64xf32>
    %181 = tpu.matmul %180, %179, %cst_41 {dimension_numbers = #tpu.dot_dimension_numbers<[1], [0], [0], [1], [0, 0, 1, 1], [], []>} : vector<1x16xf32>, vector<16x64xf32>, vector<1x64xf32> -> vector<1x64xf32>
    %c6 = arith.constant 6 : index
    %c0_42 = arith.constant 0 : index
    %182 = vector.load %arg5[%c6, %c0_42] : memref<8x64xf32, #tpu.memory_space<vmem>>, vector<1x64xf32>
    tpu.vector_store %arg5[%c6, %c0_42], %181 {strides = array<i32>} : memref<8x64xf32, #tpu.memory_space<vmem>>, vector<1x64xf32>,
    %183 = vector.extract_strided_slice %97 {offsets = [0, 7], sizes = [16, 1], strides = [1, 1]} : vector<16x8xf32> to vector<16x1xf32>
    %184 = vector.extract_strided_slice %90 {offsets = [7, 0], sizes = [1, 64], strides = [1, 1]} : vector<8x64xf32> to vector<1x64xf32>
    %185 = vector.broadcast %183 : vector<16x1xf32> to vector<16x64xf32>
    %186 = vector.broadcast %184 : vector<1x64xf32> to vector<16x64xf32>
    %187 = arith.mulf %185, %186 : vector<16x64xf32>
    %188 = vector.extract_strided_slice %96 {offsets = [7, 0, 0], sizes = [1, 16, 64], strides = [1, 1, 1]} : vector<8x16x64xf32> to vector<1x16x64xf32>
    %189 = vector.shape_cast %188 : vector<1x16x64xf32> to vector<16x64xf32>
    %190 = arith.mulf %189, %179 : vector<16x64xf32>
    %191 = arith.addf %190, %187 : vector<16x64xf32>
    %192 = vector.extract_strided_slice %63 {offsets = [7, 0], sizes = [1, 16], strides = [1, 1]} : vector<8x16xf32> to vector<1x16xf32>
    %cst_43 = arith.constant dense<0.000000e+00> : vector<1x64xf32>
    %193 = tpu.matmul %192, %191, %cst_43 {dimension_numbers = #tpu.dot_dimension_numbers<[1], [0], [0], [1], [0, 0, 1, 1], [], []>} : vector<1x16xf32>, vector<16x64xf32>, vector<1x64xf32> -> vector<1x64xf32>
    %c7 = arith.constant 7 : index
    %c0_44 = arith.constant 0 : index
    %194 = vector.load %arg5[%c7, %c0_44] : memref<8x64xf32, #tpu.memory_space<vmem>>, vector<1x64xf32>
    tpu.vector_store %arg5[%c7, %c0_44], %193 {strides = array<i32>} : memref<8x64xf32, #tpu.memory_space<vmem>>, vector<1x64xf32>,
    %c0_45 = arith.constant 0 : index
    %c0_46 = arith.constant 0 : index
    %195 = vector.load %arg5[%c0_45, %c0_46] : memref<8x64xf32, #tpu.memory_space<vmem>>, vector<8x64xf32>
    %196 = vector.broadcast %89 : vector<1x64xf32> to vector<8x64xf32>
    %197 = arith.mulf %196, %49 : vector<8x64xf32>
    %198 = arith.addf %195, %197 : vector<8x64xf32>
    %cst_47 = arith.constant 0.000000e+00 : f32
    %199 = vector.broadcast %cst_47 : f32 to vector<8x64xf32>
    %200 = arith.subf %199, %16 : vector<8x64xf32>
    %201 = math.exp %200 : vector<8x64xf32>
    %cst_48 = arith.constant 1.000000e+00 : f32
    %202 = vector.broadcast %cst_48 : f32 to vector<8x64xf32>
    %203 = arith.addf %202, %201 : vector<8x64xf32>
    %cst_49 = arith.constant 1.000000e+00 : f32
    %204 = vector.broadcast %cst_49 : f32 to vector<8x64xf32>
    %205 = arith.divf %204, %203 : vector<8x64xf32>
    %206 = arith.mulf %16, %205 : vector<8x64xf32>
    %207 = arith.mulf %198, %206 : vector<8x64xf32>
    %c160 = arith.constant 160 : index
    %c0_50 = arith.constant 0 : index
    %208 = vector.load %arg3[%c160, %c0_50] : memref<256x256xf32, #tpu.memory_space<vmem>>, vector<64x64xf32>
    %cst_51 = arith.constant dense<0.000000e+00> : vector<8x64xf32>
    %209 = tpu.matmul %207, %208, %cst_51 {dimension_numbers = #tpu.dot_dimension_numbers<[1], [0], [0], [1], [0, 0, 1, 1], [], []>} : vector<8x64xf32>, vector<64x64xf32>, vector<8x64xf32> -> vector<8x64xf32>
    %210 = vector.extract_strided_slice %209 {offsets = [0, 0], sizes = [8, 32], strides = [1, 1]} : vector<8x64xf32> to vector<8x32xf32>
    %211 = vector.broadcast %4 : vector<8x1xf32> to vector<8x32xf32>
    %212 = arith.mulf %211, %210 : vector<8x32xf32>
    %213 = vector.extract_strided_slice %209 {offsets = [0, 32], sizes = [8, 32], strides = [1, 1]} : vector<8x64xf32> to vector<8x32xf32>
    %214 = vector.broadcast %5 : vector<8x1xf32> to vector<8x32xf32>
    %215 = arith.mulf %214, %213 : vector<8x32xf32>
    %216 = arith.addf %212, %215 : vector<8x32xf32>
    %c0_52 = arith.constant 0 : index
    %c0_53 = arith.constant 0 : index
    %c0_54 = arith.constant 0 : index
    %217 = vector.load %arg4[%c0_52, %c0_53, %c0_54] : memref<1x8x32xf32, #tpu.memory_space<vmem>>, vector<1x8x32xf32>
    %218 = vector.shape_cast %217 : vector<1x8x32xf32> to vector<8x32xf32>
    %219 = vector.shape_cast %216 : vector<8x32xf32> to vector<1x8x32xf32>
    tpu.vector_store %arg4[%c0_52, %c0_53, %c0_54], %219 {strides = array<i32>} : memref<1x8x32xf32, #tpu.memory_space<vmem>>, vector<1x8x32xf32>,
    return
  }
  func.func @transform_0(%arg0: i32) -> (i32, i32, i32) {
    %c0_i32 = arith.constant 0 : i32
    %c0_i32_0 = arith.constant 0 : i32
    %c0_i32_1 = arith.constant 0 : i32
    return %arg0, %c0_i32, %c0_i32_0 : i32, i32, i32
  }
  func.func @transform_1(%arg0: i32) -> (i32, i32, i32) {
    %c0_i32 = arith.constant 0 : i32
    %c0_i32_0 = arith.constant 0 : i32
    %c0_i32_1 = arith.constant 0 : i32
    return %arg0, %c0_i32, %c0_i32_0 : i32, i32, i32
  }
  func.func @transform_2(%arg0: i32) -> (i32, i32) {
    %c0_i32 = arith.constant 0 : i32
    %c0_i32_0 = arith.constant 0 : i32
    %c0_i32_1 = arith.constant 0 : i32
    return %c0_i32, %c0_i32_0 : i32, i32
  }
  func.func @transform_3(%arg0: i32) -> (i32, i32, i32) {
    %c0_i32 = arith.constant 0 : i32
    %c0_i32_0 = arith.constant 0 : i32
    %c0_i32_1 = arith.constant 0 : i32
    return %arg0, %c0_i32, %c0_i32_0 : i32, i32, i32
  }
}

</mosaic_0001>

<llo_original>
// kernel: tpu_custom_call.1
$region0: #{tpu_custom_call.1}
  #allocation0 [shape = 'u32[]', space=smem, size = 0x4, offset = 0x4, fixed_abs, tag = 'smem constant byte address 0x4 - core index']
  #allocation1 [shape = 'u32[144,128]{1,0:T(1,128)}', space=vmem, size = 0x12000, scoped, tag = 'internal scratch']
  #allocation2 [shape = 'f32[8,64]{1,0:T(8,128)}', space=vmem, size = 0x1000, scoped, tag = 'scratch operand']
  %s0 = inlined_call_operand.vmem [shape: f32[2,8,32], index: 0, kind: input, shape index: {}]
  %s1 = inlined_call_operand.vmem [shape: f32[2,8,2], index: 1, kind: input, shape index: {}]
  %s2 = inlined_call_operand.hbm [shape: f32[256,256], index: 2, kind: input, shape index: {}]
  %s3 = inlined_call_operand.hbm [shape: f32[2,8,32], index: 3, kind: output, shape index: {}]
  %s4 = sld [smem:[#allocation0]]
  $region49: #{tpu_custom_call.1} parent=0
    _
  %s6 = ssub.s32 1, %s4
  %s7 = scalar_select 0, %s6, %s4
  $region1: #{tpu_custom_call.1} parent=0
    #allocation3 [shape = 'u8[262144]{0}', space=vmem, size = 0x40000, scoped, tag = 'input window, operand 2, single buffered']
    #allocation4 [shape = 's32[2]{0}', space=sflag, size = 0x8, scoped, tag = 'scoped memory for tpu_custom_call.1']
    #allocation5 [shape = 's32[2]{0}', space=sflag, size = 0x8, scoped, tag = 'scoped memory for tpu_custom_call.1']
    #allocation6 [shape = 'u8[8192]{0}', space=vmem, size = 0x2000, scoped, tag = 'output window, operand 0']
    %8 = vsyncpa [#allocation4], 0
    %9 = vsyncpa [#allocation5], 0
    %s10 = scalar_lea.sflag [#allocation5], 1
    %11 = vsyncpa %s10, 0
    loop: start=0, step=1, limit=4
    $region2: #{tpu_custom_call.1} parent=1 // loop_pre_header
      _
    $region3: #{tpu_custom_call.1} parent=1 // loop_header
      %s13 = sphi 0, %s17
      %p14 = scmp.ge.s32.totalorder %s13, 4
      %s23 = sphi 0, %s25
      %s26 = sphi 0, %s23
      %s27 = sphi 0, %s26
      %s43 = sphi 0, %s27
      %s49 = sphi 0, %s51
      %s52 = sphi 0, %s49
      %s53 = sphi 0, %s52
      %s69 = sphi 0, %s53
      %s73 = sphi 0, %s73
      %s75 = sphi 0, %s73
      %s76 = sphi 0, %s75
      %s90 = sphi 0, %s76
      %s96 = sphi 0, %s98
      %s99 = sphi 0, %s96
      %s100 = sphi 0, %s99
      %s116 = sphi 0, %s100
    $region4: #{tpu_custom_call.1} parent=1 // loop_header_branch
      %16 = sbr.rel (%p14) target = $region8
    $region5: #{tpu_custom_call.1} parent=1 // loop_body
      %s18 = ssub.s32 %s13, 1
      %s19 = ssub.s32 %s13, 2
      %s20 = sadd.s32 %s13, 1
      %s21 = ssub.s32 %s13, %s20
      %p22 = scmp.eq.s32.totalorder %s21, 0
      %s24 = sadd.s32 %s23, 1
      %s25 = scalar_select %p22, %s23, %s24
      %p28 = pneg %p22
      %p29 = scmp.eq.s32.totalorder %s13, 1
      %p30 = por %p28, %p29
      %p31 = scmp.ne.s32.totalorder %s23, %s26
      %p32 = scmp.eq.s32.totalorder %s13, 0
      %p33 = por %p31, %p32
      %p34 = scmp.ne.s32.totalorder %s23, %s26
      %p35 = scmp.eq.s32.totalorder %s18, 1
      %p36 = por %p34, %p35
      %p37 = scmp.ne.s32.totalorder %s26, %s27
      %p38 = scmp.eq.s32.totalorder %s18, 0
      %p39 = por %p37, %p38
      %p40 = scmp.ne.s32.totalorder %s26, %s27
      %p41 = scmp.eq.s32.totalorder %s19, 1
      %p42 = por %p40, %p41
      %p44 = scmp.ne.s32.totalorder %s27, %s43
      %p45 = scmp.eq.s32.totalorder %s19, 0
      %p46 = por %p44, %p45
      %s47 = ssub.s32 %s13, %s20
      %p48 = scmp.eq.s32.totalorder %s47, 0
      %s50 = sadd.s32 %s49, 1
      %s51 = scalar_select %p48, %s49, %s50
      %p54 = pneg %p48
      %p55 = scmp.eq.s32.totalorder %s13, 1
      %p56 = por %p54, %p55
      %p57 = scmp.ne.s32.totalorder %s49, %s52
      %p58 = scmp.eq.s32.totalorder %s13, 0
      %p59 = por %p57, %p58
      %p60 = scmp.ne.s32.totalorder %s49, %s52
      %p61 = scmp.eq.s32.totalorder %s18, 1
      %p62 = por %p60, %p61
      %p63 = scmp.ne.s32.totalorder %s52, %s53
      %p64 = scmp.eq.s32.totalorder %s18, 0
      %p65 = por %p63, %p64
      %p66 = scmp.ne.s32.totalorder %s52, %s53
      %p67 = scmp.eq.s32.totalorder %s19, 1
      %p68 = por %p66, %p67
      %p70 = scmp.ne.s32.totalorder %s53, %s69
      %p71 = scmp.eq.s32.totalorder %s19, 0
      %p72 = por %p70, %p71
      %s74 = sadd.s32 %s73, 1
      %p77 = scmp.eq.s32.totalorder %s13, 1
      %p78 = scmp.ne.s32.totalorder %s73, %s75
      %p79 = scmp.eq.s32.totalorder %s13, 0
      %p80 = por %p78, %p79
      %p81 = scmp.ne.s32.totalorder %s73, %s75
      %p82 = scmp.eq.s32.totalorder %s18, 1
      %p83 = por %p81, %p82
      %p84 = scmp.ne.s32.totalorder %s75, %s76
      %p85 = scmp.eq.s32.totalorder %s18, 0
      %p86 = por %p84, %p85
      %p87 = scmp.ne.s32.totalorder %s75, %s76
      %p88 = scmp.eq.s32.totalorder %s19, 1
      %p89 = por %p87, %p88
      %p91 = scmp.ne.s32.totalorder %s76, %s90
      %p92 = scmp.eq.s32.totalorder %s19, 0
      %p93 = por %p91, %p92
      %s94 = ssub.s32 %s13, %s20
      %p95 = scmp.eq.s32.totalorder %s94, 0
      %s97 = sadd.s32 %s96, 1
      %s98 = scalar_select %p95, %s96, %s97
      %p101 = pneg %p95
      %p102 = scmp.eq.s32.totalorder %s13, 1
      %p103 = por %p101, %p102
      %p104 = scmp.ne.s32.totalorder %s96, %s99
      %p105 = scmp.eq.s32.totalorder %s13, 0
      %p106 = por %p104, %p105
      %p107 = scmp.ne.s32.totalorder %s96, %s99
      %p108 = scmp.eq.s32.totalorder %s18, 1
      %p109 = por %p107, %p108
      %p110 = scmp.ne.s32.totalorder %s99, %s100
      %p111 = scmp.eq.s32.totalorder %s18, 0
      %p112 = por %p110, %p111
      %p113 = scmp.ne.s32.totalorder %s99, %s100
      %p114 = scmp.eq.s32.totalorder %s19, 1
      %p115 = por %p113, %p114
      %p117 = scmp.ne.s32.totalorder %s100, %s116
      %p118 = scmp.eq.s32.totalorder %s19, 0
      %p119 = por %p117, %p118
      %p120 = scmp.le.s32.totalorder 1, %s13
      %p121 = scmp.lt.s32.totalorder %s13, 3
      %p122 = pnand %p120, %p121
      %p123 = pneg %p122
      // Predicated region
      $region9: #{tpu_custom_call.1} parent=5 // pred_check
        _
      $region10: #{tpu_custom_call.1} parent=5 // pred_check_branch
        %125 = sbr.rel (%p122) target = $region12
      $region11: #{tpu_custom_call.1} parent=5 // pred_region
        %s126 = ssub.s32 %s13, 1
        // Predicated region
        $region13: #{tpu_custom_call.1} parent=11 // pred_check
          %p127 = pneg %p86
        $region14: #{tpu_custom_call.1} parent=11 // pred_check_branch
          %129 = sbr.rel (%p127) target = $region16
        $region15: #{tpu_custom_call.1} parent=11 // pred_region
          %s131 = ssub.s32 8192, 8192
          %132 = vsyncadd [#allocation4], %s131
          %s133 = sshll.u32 [#allocation3], 4
          %s134 = int_to_ptr.vmem [resolvable:$true] %s133
          %139 = dma.hbm_to_vmem [thread:$0]  %s2, 8192, %s134, [#allocation4], 256, 256, 16
        $region16: #{tpu_custom_call.1} parent=11 // pred_fallthru
          _
      $region12: #{tpu_custom_call.1} parent=5 // pred_fallthru
        _
      %p140 = scmp.lt.s32.totalorder %s13, 2
      // Predicated region
      $region17: #{tpu_custom_call.1} parent=5 // pred_check
        %p141 = pneg %p140
      $region18: #{tpu_custom_call.1} parent=5 // pred_check_branch
        %143 = sbr.rel (%p141) target = $region20
      $region19: #{tpu_custom_call.1} parent=5 // pred_region
        // Predicated region
        $region21: #{tpu_custom_call.1} parent=19 // pred_check
          %p144 = pneg %p33
        $region22: #{tpu_custom_call.1} parent=19 // pred_check_branch
          %146 = sbr.rel (%p144) target = $region24
        $region23: #{tpu_custom_call.1} parent=19 // pred_region
          %p147 = scmp.lt.s32.totalorder %s13, 1
          %s148 = scalar_select %p147, %s13, 1
          %s149 = smul.addr %s148, 8
          %s150 = scalar_lea.vmem %s0, %s149
        $region24: #{tpu_custom_call.1} parent=19 // pred_fallthru
          _
        // Predicated region
        $region25: #{tpu_custom_call.1} parent=19 // pred_check
          %p151 = pneg %p59
        $region26: #{tpu_custom_call.1} parent=19 // pred_check_branch
          %153 = sbr.rel (%p151) target = $region28
        $region27: #{tpu_custom_call.1} parent=19 // pred_region
          %p154 = scmp.lt.s32.totalorder %s13, 1
          %s155 = scalar_select %p154, %s13, 1
          %s156 = smul.addr %s155, 8
          %s157 = scalar_lea.vmem %s1, %s156
        $region28: #{tpu_custom_call.1} parent=19 // pred_fallthru
          _
      $region20: #{tpu_custom_call.1} parent=5 // pred_fallthru
        _
      %p158 = scmp.le.s32.totalorder 1, %s13
      %p159 = scmp.lt.s32.totalorder %s13, 3
      %p160 = pnand %p158, %p159
      %p161 = pneg %p160
      // Predicated region
      $region29: #{tpu_custom_call.1} parent=5 // pred_check
        _
      $region30: #{tpu_custom_call.1} parent=5 // pred_check_branch
        %163 = sbr.rel (%p160) target = $region32
      $region31: #{tpu_custom_call.1} parent=5 // pred_region
        %s164 = ssub.s32 %s13, 1
        // Predicated region
        $region33: #{tpu_custom_call.1} parent=31 // pred_check
          %p165 = pneg %p86
        $region34: #{tpu_custom_call.1} parent=31 // pred_check_branch
          %167 = sbr.rel (%p165) target = $region36
        $region35: #{tpu_custom_call.1} parent=31 // pred_region
          %168 = dma.done [#allocation4], 8192
        $region36: #{tpu_custom_call.1} parent=31 // pred_fallthru
          _
        %p169 = scmp.lt.s32.totalorder %s18, 1
        %s170 = scalar_select %p169, %s18, 1
        %s171 = smul.addr %s170, 8
        %s172 = scalar_lea.vmem %s0, %s171
        %p173 = pneg %p39
        %p174 = pneg %p36
        %p175 = scmp.lt.s32.totalorder %s18, 1
        %s176 = scalar_select %p175, %s18, 1
        %s177 = smul.addr %s176, 8
        %s178 = scalar_lea.vmem %s1, %s177
        %p179 = pneg %p65
        %p180 = pneg %p62
        %p181 = pneg %p86
        %p182 = pneg %p83
        %p183 = pneg %p112
        %p184 = pneg %p109
        %s185 = sand.u32 %s99, 1
        %s186 = scalar_lea.sflag [#allocation5], %s185
        %s187 = sand.u32 %s99, 1
        %s188 = smul.addr %s187, 8
        %s189 = scalar_lea.vmem [#allocation6], %s188
        %p190 = scmp.lt.s32.totalorder %s18, 1
        %s191 = scalar_select %p190, %s18, 1
        %s192 = smul.addr %s191, 8
        %s193 = scalar_lea.vmem %s0, %s192
        %p194 = scmp.lt.s32.totalorder %s18, 1
        %s195 = scalar_select %p194, %s18, 1
        %s196 = smul.addr %s195, 8
        %s197 = scalar_lea.vmem %s1, %s196
        %v198 = vld [vmem:[%s193] sm:$0xff]
        %v199 = vld [vmem:[%s197] sm:$0xff]
        %v200 = vld [vmem:[#allocation3] sm:$0xff]
        %v201 = vld [vmem:[#allocation3 + $0x8] sm:$0xff]
        %v202 = vld [vmem:[#allocation3 + $0x10] sm:$0xff]
        %v203 = vld [vmem:[#allocation3 + $0x18] sm:$0xff]
        %v204 = vld [vmem:[#allocation3 + $0x20] sm:$0xff]
        %v205 = vld [vmem:[#allocation3 + $0x28] sm:$0xff]
        %v206 = vld [vmem:[#allocation3 + $0x30] sm:$0xff]
        %v207 = vld [vmem:[#allocation3 + $0x38] sm:$0xff]
        %vm208 = vcmask 261120
        %v210 = vsel %vm208, %v198, 0
        %212 = vmatprep.subr.mxu0 %v201
        %213 = vmatpush1.msra.mxu0 %v200
        %214 = vmatprep.subr.mxu0 %v203
        %215 = vmatpush1.msra.mxu0 %v202
        %216 = vmatprep.subr.mxu0 %v205
        %217 = vmatpush1.msra.mxu0 %v204
        %218 = vmatprep.subr.mxu0 %v207
        %219 = vmatpush1.msra.mxu0 %v206
        %220 = vmatprep.subr.mxu0 0.0
        %221 = vmatpush1.msra.mxu0 0.0
        %222 = vmatprep.subr.mxu0 0.0
        %223 = vmatpush1.msra.mxu0 0.0
        %224 = vmatprep.subr.mxu0 0.0
        %225 = vmatpush1.msra.mxu0 0.0
        %226 = vmatprep.subr.mxu0 0.0
        %227 = vmatpush1.msra.mxu0 0.0
        %228 = vmatprep.subr.mxu0 0.0
        %229 = vmatpush1.msra.mxu0 0.0
        %230 = vmatprep.subr.mxu0 0.0
        %231 = vmatpush1.msra.mxu0 0.0
        %232 = vmatprep.subr.mxu0 0.0
        %233 = vmatpush1.msra.mxu0 0.0
        %234 = vmatprep.subr.mxu0 0.0
        %235 = vmatpush1.msra.mxu0 0.0
        %236 = vmatprep.subr.mxu0 0.0
        %237 = vmatpush1.msra.mxu0 0.0
        %238 = vmatprep.subr.mxu0 0.0
        %239 = vmatpush1.msra.mxu0 0.0
        %240 = vmatprep.subr.mxu0 0.0
        %241 = vmatpush1.msra.mxu0 0.0
        %242 = vmatprep.subr.mxu0 0.0
        %243 = vmatpush1.msra.mxu0 0.0
        %244 = vmatprep.subr.mxu0 0.0
        %245 = vmatpush1.msra.mxu0 0.0
        %246 = vmatprep.subr.mxu0 0.0
        %247 = vmatpush1.msra.mxu0 0.0
        %248 = vmatprep.subr.mxu0 0.0
        %249 = vmatpush1.msra.mxu0 0.0
        %250 = vmatprep.subr.mxu0 0.0
        %251 = vmatpush1.msra.mxu0 0.0
        %252 = vmatprep.subr.mxu0 0.0
        %253 = vmatpush1.msra.mxu0 0.0
        %254 = vmatprep.subr.mxu0 0.0
        %255 = vmatpush1.msra.mxu0 0.0
        %256 = vmatprep.subr.mxu0 0.0
        %257 = vmatpush1.msra.mxu0 0.0
        %258 = vmatprep.subr.mxu0 0.0
        %259 = vmatpush1.msra.mxu0 0.0
        %260 = vmatprep.subr.mxu0 0.0
        %261 = vmatpush1.msra.mxu0 0.0
        %262 = vmatprep.subr.mxu0 0.0
        %263 = vmatpush1.msra.mxu0 0.0
        %264 = vmatprep.subr.mxu0 0.0
        %265 = vmatpush1.msra.mxu0 0.0
        %266 = vmatprep.subr.mxu0 0.0
        %267 = vmatpush1.msra.mxu0 0.0
        %268 = vmatprep.subr.mxu0 0.0
        %269 = vmatpush1.msra.mxu0 0.0
        %270 = vmatprep.subr.mxu0 0.0
        %271 = vmatpush1.msra.mxu0 0.0
        %272 = vmatprep.subr.mxu0 0.0
        %273 = vmatpush1.msra.mxu0 0.0
        %274 = vmatprep.subr.mxu0 0.0
        %275 = vmatpush1.msra.mxu0 0.0
        %276 = vmatprep.mubr.f32.mxu0 0.0
        %277 = vmatmul.mubr.f32.gmra.mrb[0].mxu0 %v210
        %v278 = vpop.f32.mrb[0].mxu0
        %v279 = vadd.f32 0.0, %v278
        %v280 = vpop.f32.mrb[0].mxu0
        %v281 = vadd.f32 0.0, %v280
        %282 = vdwg.mxu0
        %284 = vset.pattern.permute.xlu0 0
        %285 = vperm.xlu0 %284, %v199
        %v286 = vpop.permute.xlu0 %285
        %v288 = vmul.f32 %v286, %v279
        %289 = vset.pattern.permute.xlu0 1
        %290 = vperm.xlu0 %289, %v199
        %v291 = vpop.permute.xlu0 %290
        %v293 = vmul.f32 %v291, %v281
        %v294 = vadd.f32 %v288, %v293
        %v295 = vld [vmem:[#allocation3 + $0x1e0] sm:$0xf]
        %v296 = vld [vmem:[#allocation3 + $0x1e4] ss:$0 sm:$0xff]
        %v298 = vrot.slane %v294, 5
        %vm300 = vcmask 1042432
        %v301 = vsel %vm300, 0.0, %v298
        %v302 = vlaneseq
        %v303 = vshrl.u32 %v302, 7
        %v304 = vsub.s32 0, %v303
        %v305 = vrot.slane %v295, %v304
        %v306 = vmul.f32 %v301, %v305
        %v307 = vadd.f32 %v296, %v306
        %v308 = vlaneseq
        %v309 = vshrl.u32 %v308, 7
        %v310 = vsub.s32 1, %v309
        %v311 = vrot.slane %v295, %v310
        %v312 = vmul.f32 %v301, %v311
        %v313 = vmul.f32 %v298, %v311
        %vm316 = vcmask 1046528
        %v317 = vrot.slane %v312, 1
        %v318 = vrot.slane %v313, 1
        %v319 = vsel %vm316, %v317, %v318
        %v321 = vadd.f32 %v307, %v319
        %v322 = vlaneseq
        %v323 = vshrl.u32 %v322, 7
        %v324 = vsub.s32 2, %v323
        %v325 = vrot.slane %v295, %v324
        %v326 = vmul.f32 %v301, %v325
        %v327 = vmul.f32 %v298, %v325
        %vm330 = vcmask 1045504
        %v331 = vrot.slane %v326, 2
        %v332 = vrot.slane %v327, 2
        %v333 = vsel %vm330, %v331, %v332
        %v335 = vadd.f32 %v321, %v333
        %v336 = vlaneseq
        %v337 = vshrl.u32 %v336, 7
        %v338 = vsub.s32 3, %v337
        %v339 = vrot.slane %v295, %v338
        %v340 = vmul.f32 %v301, %v339
        %v341 = vmul.f32 %v298, %v339
        %vm344 = vcmask 1044480
        %v345 = vrot.slane %v340, 3
        %v346 = vrot.slane %v341, 3
        %v347 = vsel %vm344, %v345, %v346
        %v349 = vadd.f32 %v335, %v347
        %v350 = vsub.f32 0.0, %v349
        %v351 = vmul.f32 %v350, 1.442695
        %v352 = vpow.pop %v351
        %v353 = vadd.f32 %v352, 1.0
        %v354 = vrcp.pop %v353
        %v355 = vmul.f32 1.0, %v354
        %v356 = vmul.f32 %v349, %v355
        %v357 = vld [vmem:[#allocation3 + $0x40] sm:$0xff]
        %v358 = vld [vmem:[#allocation3 + $0x50] sm:$0xff]
        %v359 = vld [vmem:[#allocation3 + $0x60] sm:$0xff]
        %v360 = vld [vmem:[#allocation3 + $0x70] sm:$0xff]
        %v361 = vld [vmem:[#allocation3 + $0x80] sm:$0xff]
        %v362 = vld [vmem:[#allocation3 + $0x90] sm:$0xff]
        %v363 = vld [vmem:[#allocation3 + $0xa0] sm:$0xff]
        %v364 = vld [vmem:[#allocation3 + $0xb0] sm:$0xff]
        %vm365 = vcmask 523264
        %v367 = vsel %vm365, %v356, 0
        %369 = vmatprep.subr.mxu0 0.0
        %370 = vmatpush1.msra.mxu0 %v357
        %371 = vmatprep.subr.mxu0 0.0
        %372 = vmatpush1.msra.mxu0 %v358
        %373 = vmatprep.subr.mxu0 0.0
        %374 = vmatpush1.msra.mxu0 %v359
        %375 = vmatprep.subr.mxu0 0.0
        %376 = vmatpush1.msra.mxu0 %v360
        %377 = vmatprep.subr.mxu0 0.0
        %378 = vmatpush1.msra.mxu0 %v361
        %379 = vmatprep.subr.mxu0 0.0
        %380 = vmatpush1.msra.mxu0 %v362
        %381 = vmatprep.subr.mxu0 0.0
        %382 = vmatpush1.msra.mxu0 %v363
        %383 = vmatprep.subr.mxu0 0.0
        %384 = vmatpush1.msra.mxu0 %v364
        %385 = vmatprep.subr.mxu0 0.0
        %386 = vmatpush1.msra.mxu0 0.0
        %387 = vmatprep.subr.mxu0 0.0
        %388 = vmatpush1.msra.mxu0 0.0
        %389 = vmatprep.subr.mxu0 0.0
        %390 = vmatpush1.msra.mxu0 0.0
        %391 = vmatprep.subr.mxu0 0.0
        %392 = vmatpush1.msra.mxu0 0.0
        %393 = vmatprep.subr.mxu0 0.0
        %394 = vmatpush1.msra.mxu0 0.0
        %395 = vmatprep.subr.mxu0 0.0
        %396 = vmatpush1.msra.mxu0 0.0
        %397 = vmatprep.subr.mxu0 0.0
        %398 = vmatpush1.msra.mxu0 0.0
        %399 = vmatprep.subr.mxu0 0.0
        %400 = vmatpush1.msra.mxu0 0.0
        %401 = vmatprep.subr.mxu0 0.0
        %402 = vmatpush1.msra.mxu0 0.0
        %403 = vmatprep.subr.mxu0 0.0
        %404 = vmatpush1.msra.mxu0 0.0
        %405 = vmatprep.subr.mxu0 0.0
        %406 = vmatpush1.msra.mxu0 0.0
        %407 = vmatprep.subr.mxu0 0.0
        %408 = vmatpush1.msra.mxu0 0.0
        %409 = vmatprep.subr.mxu0 0.0
        %410 = vmatpush1.msra.mxu0 0.0
        %411 = vmatprep.subr.mxu0 0.0
        %412 = vmatpush1.msra.mxu0 0.0
        %413 = vmatprep.subr.mxu0 0.0
        %414 = vmatpush1.msra.mxu0 0.0
        %415 = vmatprep.subr.mxu0 0.0
        %416 = vmatpush1.msra.mxu0 0.0
        %417 = vmatprep.subr.mxu0 0.0
        %418 = vmatpush1.msra.mxu0 0.0
        %419 = vmatprep.subr.mxu0 0.0
        %420 = vmatpush1.msra.mxu0 0.0
        %421 = vmatprep.subr.mxu0 0.0
        %422 = vmatpush1.msra.mxu0 0.0
        %423 = vmatprep.subr.mxu0 0.0
        %424 = vmatpush1.msra.mxu0 0.0
        %425 = vmatprep.subr.mxu0 0.0
        %426 = vmatpush1.msra.mxu0 0.0
        %427 = vmatprep.subr.mxu0 0.0
        %428 = vmatpush1.msra.mxu0 0.0
        %429 = vmatprep.subr.mxu0 0.0
        %430 = vmatpush1.msra.mxu0 0.0
        %431 = vmatprep.subr.mxu0 0.0
        %432 = vmatpush1.msra.mxu0 0.0
        %433 = vmatprep.mubr.f32.mxu0 0.0
        %434 = vmatmul.mubr.f32.gmra.mrb[0].mxu0 %v367
        %v435 = vpop.f32.mrb[0].mxu0
        %v436 = vadd.f32 0.0, %v435
        %v437 = vpop.f32.mrb[0].mxu0
        %438 = vdwg.mxu0
        %v439 = vmul.f32 %v286, %v436
        %v440 = vadd.f32 %v439, 0.0
        %v441 = vld [vmem:[#allocation3 + $0xc0] sm:$0xff]
        %v442 = vld [vmem:[#allocation3 + $0xd0] sm:$0xff]
        %v443 = vld [vmem:[#allocation3 + $0xe0] sm:$0xff]
        %v444 = vld [vmem:[#allocation3 + $0xf0] sm:$0xff]
        %v445 = vld [vmem:[#allocation3 + $0x100] sm:$0xff]
        %v446 = vld [vmem:[#allocation3 + $0x110] sm:$0xff]
        %v447 = vld [vmem:[#allocation3 + $0x120] sm:$0xff]
        %v448 = vld [vmem:[#allocation3 + $0x130] sm:$0xff]
        %449 = vmatprep.subr.mxu0 0.0
        %450 = vmatpush1.msra.mxu0 %v441
        %451 = vmatprep.subr.mxu0 0.0
        %452 = vmatpush1.msra.mxu0 %v442
        %453 = vmatprep.subr.mxu0 0.0
        %454 = vmatpush1.msra.mxu0 %v443
        %455 = vmatprep.subr.mxu0 0.0
        %456 = vmatpush1.msra.mxu0 %v444
        %457 = vmatprep.subr.mxu0 0.0
        %458 = vmatpush1.msra.mxu0 %v445
        %459 = vmatprep.subr.mxu0 0.0
        %460 = vmatpush1.msra.mxu0 %v446
        %461 = vmatprep.subr.mxu0 0.0
        %462 = vmatpush1.msra.mxu0 %v447
        %463 = vmatprep.subr.mxu0 0.0
        %464 = vmatpush1.msra.mxu0 %v448
        %465 = vmatprep.subr.mxu0 0.0
        %466 = vmatpush1.msra.mxu0 0.0
        %467 = vmatprep.subr.mxu0 0.0
        %468 = vmatpush1.msra.mxu0 0.0
        %469 = vmatprep.subr.mxu0 0.0
        %470 = vmatpush1.msra.mxu0 0.0
        %471 = vmatprep.subr.mxu0 0.0
        %472 = vmatpush1.msra.mxu0 0.0
        %473 = vmatprep.subr.mxu0 0.0
        %474 = vmatpush1.msra.mxu0 0.0
        %475 = vmatprep.subr.mxu0 0.0
        %476 = vmatpush1.msra.mxu0 0.0
        %477 = vmatprep.subr.mxu0 0.0
        %478 = vmatpush1.msra.mxu0 0.0
        %479 = vmatprep.subr.mxu0 0.0
        %480 = vmatpush1.msra.mxu0 0.0
        %481 = vmatprep.subr.mxu0 0.0
        %482 = vmatpush1.msra.mxu0 0.0
        %483 = vmatprep.subr.mxu0 0.0
        %484 = vmatpush1.msra.mxu0 0.0
        %485 = vmatprep.subr.mxu0 0.0
        %486 = vmatpush1.msra.mxu0 0.0
        %487 = vmatprep.subr.mxu0 0.0
        %488 = vmatpush1.msra.mxu0 0.0
        %489 = vmatprep.subr.mxu0 0.0
        %490 = vmatpush1.msra.mxu0 0.0
        %491 = vmatprep.subr.mxu0 0.0
        %492 = vmatpush1.msra.mxu0 0.0
        %493 = vmatprep.subr.mxu0 0.0
        %494 = vmatpush1.msra.mxu0 0.0
        %495 = vmatprep.subr.mxu0 0.0
        %496 = vmatpush1.msra.mxu0 0.0
        %497 = vmatprep.subr.mxu0 0.0
        %498 = vmatpush1.msra.mxu0 0.0
        %499 = vmatprep.subr.mxu0 0.0
        %500 = vmatpush1.msra.mxu0 0.0
        %501 = vmatprep.subr.mxu0 0.0
        %502 = vmatpush1.msra.mxu0 0.0
        %503 = vmatprep.subr.mxu0 0.0
        %504 = vmatpush1.msra.mxu0 0.0
        %505 = vmatprep.subr.mxu0 0.0
        %506 = vmatpush1.msra.mxu0 0.0
        %507 = vmatprep.subr.mxu0 0.0
        %508 = vmatpush1.msra.mxu0 0.0
        %509 = vmatprep.subr.mxu0 0.0
        %510 = vmatpush1.msra.mxu0 0.0
        %511 = vmatprep.subr.mxu0 0.0
        %512 = vmatpush1.msra.mxu0 0.0
        %513 = vmatprep.mubr.f32.mxu0 0.0
        %514 = vmatmul.mubr.f32.gmra.mrb[0].mxu0 %v367
        %v515 = vpop.f32.mrb[0].mxu0
        %v516 = vadd.f32 0.0, %v515
        %v517 = vpop.f32.mrb[0].mxu0
        %518 = vdwg.mxu0
        %v519 = vmul.f32 %v291, %v516
        %v520 = vadd.f32 %v440, %v519
        %v521 = vld [vmem:[#allocation3 + $0x1e0] sm:$0xc0]
        %v522 = vld [vmem:[#allocation3 + $0x1f0] ss:$0 sm:$0xff]
        %v524 = vrot.slane %v521, 6
        %vm525 = vcmask 15360
        %v527 = vsel %vm525, %v520, 0
        %vm529 = vcmask 1041408
        %v530 = vsel %vm529, %v524, 0
        %532 = vmatprep.subr.mxu0 0.0
        %533 = vmatpush1.msra.mxu0 %v530
        %534 = vmatprep.subr.mxu0 0.0
        %535 = vmatpush1.msra.mxu0 0.0
        %536 = vmatprep.subr.mxu0 0.0
        %537 = vmatpush1.msra.mxu0 0.0
        %538 = vmatprep.subr.mxu0 0.0
        %539 = vmatpush1.msra.mxu0 0.0
        %540 = vmatprep.subr.mxu0 0.0
        %541 = vmatpush1.msra.mxu0 0.0
        %542 = vmatprep.subr.mxu0 0.0
        %543 = vmatpush1.msra.mxu0 0.0
        %544 = vmatprep.subr.mxu0 0.0
        %545 = vmatpush1.msra.mxu0 0.0
        %546 = vmatprep.subr.mxu0 0.0
        %547 = vmatpush1.msra.mxu0 0.0
        %548 = vmatprep.subr.mxu0 0.0
        %549 = vmatpush1.msra.mxu0 0.0
        %550 = vmatprep.subr.mxu0 0.0
        %551 = vmatpush1.msra.mxu0 0.0
        %552 = vmatprep.subr.mxu0 0.0
        %553 = vmatpush1.msra.mxu0 0.0
        %554 = vmatprep.subr.mxu0 0.0
        %555 = vmatpush1.msra.mxu0 0.0
        %556 = vmatprep.subr.mxu0 0.0
        %557 = vmatpush1.msra.mxu0 0.0
        %558 = vmatprep.subr.mxu0 0.0
        %559 = vmatpush1.msra.mxu0 0.0
        %560 = vmatprep.subr.mxu0 0.0
        %561 = vmatpush1.msra.mxu0 0.0
        %562 = vmatprep.subr.mxu0 0.0
        %563 = vmatpush1.msra.mxu0 0.0
        %564 = vmatprep.subr.mxu0 0.0
        %565 = vmatpush1.msra.mxu0 0.0
        %566 = vmatprep.subr.mxu0 0.0
        %567 = vmatpush1.msra.mxu0 0.0
        %568 = vmatprep.subr.mxu0 0.0
        %569 = vmatpush1.msra.mxu0 0.0
        %570 = vmatprep.subr.mxu0 0.0
        %571 = vmatpush1.msra.mxu0 0.0
        %572 = vmatprep.subr.mxu0 0.0
        %573 = vmatpush1.msra.mxu0 0.0
        %574 = vmatprep.subr.mxu0 0.0
        %575 = vmatpush1.msra.mxu0 0.0
        %576 = vmatprep.subr.mxu0 0.0
        %577 = vmatpush1.msra.mxu0 0.0
        %578 = vmatprep.subr.mxu0 0.0
        %579 = vmatpush1.msra.mxu0 0.0
        %580 = vmatprep.subr.mxu0 0.0
        %581 = vmatpush1.msra.mxu0 0.0
        %582 = vmatprep.subr.mxu0 0.0
        %583 = vmatpush1.msra.mxu0 0.0
        %584 = vmatprep.subr.mxu0 0.0
        %585 = vmatpush1.msra.mxu0 0.0
        %586 = vmatprep.subr.mxu0 0.0
        %587 = vmatpush1.msra.mxu0 0.0
        %588 = vmatprep.subr.mxu0 0.0
        %589 = vmatpush1.msra.mxu0 0.0
        %590 = vmatprep.subr.mxu0 0.0
        %591 = vmatpush1.msra.mxu0 0.0
        %592 = vmatprep.subr.mxu0 0.0
        %593 = vmatpush1.msra.mxu0 0.0
        %594 = vmatprep.subr.mxu0 0.0
        %595 = vmatpush1.msra.mxu0 0.0
        %596 = vmatprep.mubr.f32.mxu0 0.0
        %597 = vmatmul.mubr.f32.gmra.mrb[0].mxu0 %v527
        %v598 = vpop.f32.mrb[0].mxu0
        %v599 = vadd.f32 %v522, %v598
        %v600 = vpop.f32.mrb[0].mxu0
        %601 = vdwg.mxu0
        %v602 = vmul.f32 %v286, %v599
        %v603 = vmul.f32 %v291, %v599
        %605 = vrot.lane.b32.xlu0 %v603, 64
        %v606 = vpop.permute.xlu0 %605
        %v608 = vadd.f32 %v602, %v606
        %vm609 = vcmp.gt.f32.partialorder %v608, 20.0
        %v610 = vmin.f32 %v608, 20.0
        %v611 = vmul.f32 %v610, 1.442695
        %v612 = vpow.pop %v611
        %v613 = vadd.f32 %v612, 1.0
        %v614 = vlog2.pop %v613
        %v615 = vmul.f32 %v614, 0.6931472
        %v616 = vsel %vm609, %v608, %v615
        %v617 = vld [vmem:[#allocation3 + $0x1c0] sm:$0xff]
        %v618 = vld [vmem:[#allocation3 + $0x1d0] sm:$0xff]
        %v619 = vmul.f32 %v617, 1.442695
        %v620 = vpow.pop %v619
        %v621 = vmul.f32 %v618, 1.442695
        %v622 = vpow.pop %v621
        %v623 = vsub.f32 0.0, %v620
        %v624 = vsub.f32 0.0, %v622
        %v625 = vld [vmem:[#allocation3 + $0x1e5] ss:$0 sm:$0xff]
        %v626 = vmul.f32 %v616, %v356
        %v628 = vcombine.high %v616, %v616
        %v630 = vunpack.c.l.s4 1966171168
        %v631 = vunpack.c.0.s8 %v630
        %v632 = vlaneseq
        %v633 = vshrl.u32 %v632, 7
        %v634 = vsub.s32 %v631, %v633
        %v635 = vrot.slane %v616, %v634
        %v637 = vunpack.c.l.s4 1966171168
        %v638 = vunpack.c.0.s8 %v637
        %v639 = vlaneseq
        %v640 = vshrl.u32 %v639, 7
        %v641 = vsub.s32 %v638, %v640
        %v642 = vrot.slane %v628, %v641
        %v643 = vcombine.high %v635, %v635
        %v644 = vcombine.high %v642, %v642
        %v646 = vunpack.c.l.s4 1966171168
        %v647 = vunpack.c.0.s8 %v646
        %v648 = vlaneseq
        %v649 = vshrl.u32 %v648, 7
        %v650 = vsub.s32 %v647, %v649
        %v651 = vrot.slane %v635, %v650
        %v653 = vunpack.c.l.s4 1966171168
        %v654 = vunpack.c.0.s8 %v653
        %v655 = vlaneseq
        %v656 = vshrl.u32 %v655, 7
        %v657 = vsub.s32 %v654, %v656
        %v658 = vrot.slane %v642, %v657
        %v660 = vunpack.c.l.s4 1966171168
        %v661 = vunpack.c.0.s8 %v660
        %v662 = vlaneseq
        %v663 = vshrl.u32 %v662, 7
        %v664 = vsub.s32 %v661, %v663
        %v665 = vrot.slane %v643, %v664
        %v667 = vunpack.c.l.s4 1966171168
        %v668 = vunpack.c.0.s8 %v667
        %v669 = vlaneseq
        %v670 = vshrl.u32 %v669, 7
        %v671 = vsub.s32 %v668, %v670
        %v672 = vrot.slane %v644, %v671
        %v673 = vcombine.high %v651, %v651
        %v674 = vcombine.high %v658, %v658
        %v675 = vcombine.high %v665, %v665
        %v676 = vcombine.high %v672, %v672
        %v677 = vlaneseq
        %v678 = vshrl.u32 %v677, 7
        %v679 = vsub.s32 0, %v678
        %v680 = vrot.slane %v651, %v679
        %v681 = vlaneseq
        %v682 = vshrl.u32 %v681, 7
        %v683 = vsub.s32 0, %v682
        %v684 = vrot.slane %v665, %v683
        %v685 = vlaneseq
        %v686 = vshrl.u32 %v685, 7
        %v687 = vsub.s32 0, %v686
        %v688 = vrot.slane %v673, %v687
        %v689 = vlaneseq
        %v690 = vshrl.u32 %v689, 7
        %v691 = vsub.s32 0, %v690
        %v692 = vrot.slane %v675, %v691
        %v693 = vlaneseq
        %v694 = vshrl.u32 %v693, 7
        %v695 = vsub.s32 0, %v694
        %v696 = vrot.slane %v658, %v695
        %v697 = vlaneseq
        %v698 = vshrl.u32 %v697, 7
        %v699 = vsub.s32 0, %v698
        %v700 = vrot.slane %v672, %v699
        %v701 = vlaneseq
        %v702 = vshrl.u32 %v701, 7
        %v703 = vsub.s32 0, %v702
        %v704 = vrot.slane %v674, %v703
        %v705 = vlaneseq
        %v706 = vshrl.u32 %v705, 7
        %v707 = vsub.s32 0, %v706
        %v708 = vrot.slane %v676, %v707
        %v717 = vmul.f32 %v680, %v623
        %v718 = vmul.f32 %v680, %v624
        %v719 = vmul.f32 %v684, %v623
        %v720 = vmul.f32 %v684, %v624
        %v721 = vmul.f32 %v688, %v623
        %v722 = vmul.f32 %v688, %v624
        %v723 = vmul.f32 %v692, %v623
        %v724 = vmul.f32 %v692, %v624
        %v725 = vmul.f32 %v696, %v623
        %v726 = vmul.f32 %v696, %v624
        %v727 = vmul.f32 %v700, %v623
        %v728 = vmul.f32 %v700, %v624
        %v729 = vmul.f32 %v704, %v623
        %v730 = vmul.f32 %v704, %v624
        %v731 = vmul.f32 %v708, %v623
        %v732 = vmul.f32 %v708, %v624
        %v733 = vmul.f32 %v717, 1.442695
        %v734 = vpow.pop %v733
        %v735 = vmul.f32 %v718, 1.442695
        %v736 = vpow.pop %v735
        %v737 = vmul.f32 %v719, 1.442695
        %v738 = vpow.pop %v737
        %v739 = vmul.f32 %v720, 1.442695
        %v740 = vpow.pop %v739
        %v741 = vmul.f32 %v721, 1.442695
        %v742 = vpow.pop %v741
        %v743 = vmul.f32 %v722, 1.442695
        %v744 = vpow.pop %v743
        %v745 = vmul.f32 %v723, 1.442695
        %v746 = vpow.pop %v745
        %v747 = vmul.f32 %v724, 1.442695
        %v748 = vpow.pop %v747
        %v749 = vmul.f32 %v725, 1.442695
        %v750 = vpow.pop %v749
        %v751 = vmul.f32 %v726, 1.442695
        %v752 = vpow.pop %v751
        %v753 = vmul.f32 %v727, 1.442695
        %v754 = vpow.pop %v753
        %v755 = vmul.f32 %v728, 1.442695
        %v756 = vpow.pop %v755
        %v757 = vmul.f32 %v729, 1.442695
        %v758 = vpow.pop %v757
        %v759 = vmul.f32 %v730, 1.442695
        %v760 = vpow.pop %v759
        %v761 = vmul.f32 %v731, 1.442695
        %v762 = vpow.pop %v761
        %v763 = vmul.f32 %v732, 1.442695
        %v764 = vpow.pop %v763
        %765 = vrot.lane.b32.xlu0 %v520, 126
        %v766 = vpop.permute.xlu0 %765
        %768 = vxpose.xlu0.b32.start [1/16] %v766, 128
        %769 = vxpose.xlu0.b32.cont [2/16] 0.0, 128
        %770 = vxpose.xlu0.b32.cont [3/16] 0.0, 128
        %771 = vxpose.xlu0.b32.cont [4/16] 0.0, 128
        %772 = vxpose.xlu0.b32.cont [5/16] 0.0, 128
        %773 = vxpose.xlu0.b32.cont [6/16] 0.0, 128
        %774 = vxpose.xlu0.b32.cont [7/16] 0.0, 128
        %775 = vxpose.xlu0.b32.cont [8/16] 0.0, 128
        %776 = vxpose.xlu0.b32.cont [9/16] 0.0, 128
        %777 = vxpose.xlu0.b32.cont [10/16] 0.0, 128
        %778 = vxpose.xlu0.b32.cont [11/16] 0.0, 128
        %779 = vxpose.xlu0.b32.cont [12/16] 0.0, 128
        %780 = vxpose.xlu0.b32.cont [13/16] 0.0, 128
        %781 = vxpose.xlu0.b32.cont [14/16] 0.0, 128
        %782 = vxpose.xlu0.b32.cont [15/16] 0.0, 128
        %783 = vxpose.xlu0.b32.end [16/16] 0.0, 128
        %v784 = vpop.trf.xlu0
        %v785 = vpop.trf.xlu0
        %v786 = vpop.trf.xlu0
        %v787 = vpop.trf.xlu0
        %v788 = vpop.trf.xlu0
        %v789 = vpop.trf.xlu0
        %v790 = vpop.trf.xlu0
        %v791 = vpop.trf.xlu0
        %v792 = vpop.trf.xlu0
        %v793 = vpop.trf.xlu0
        %v794 = vpop.trf.xlu0
        %v795 = vpop.trf.xlu0
        %v796 = vpop.trf.xlu0
        %v797 = vpop.trf.xlu0
        %v798 = vpop.trf.xlu0
        %v799 = vpop.trf.xlu0
        %801 = vset.pattern.permute.xlu0 0
        %802 = vperm.xlu0 %801, %v784
        %v803 = vpop.permute.xlu0 %802
        %806 = vset.pattern.permute.xlu0 0
        %807 = vperm.xlu0 %806, %v785
        %v808 = vpop.permute.xlu0 %807
        %v810 = vlaneseq
        %v811 = vshrl.u32 %v810, 7
        %v812 = vsub.s32 0, %v811
        %v813 = vrot.slane %v626, %v812
        %v814 = vmul.f32 %v803, %v813
        %v815 = vmul.f32 %v808, %v813
        %v816 = vmul.f32 %v734, 0.0
        %v817 = vmul.f32 %v736, 0.0
        %v818 = vadd.f32 %v816, %v814
        %v819 = vadd.f32 %v817, %v815
        %820 = vrot.lane.b32.xlu0 %v520, 110
        %v821 = vpop.permute.xlu0 %820
        %vm822 = vcmask 130048
        %v823 = vsel %vm822, %v821, 0
        %825 = vmatprep.subr.mxu0 0.0
        %826 = vmatpush1.msra.mxu0 %v818
        %827 = vmatprep.subr.mxu0 0.0
        %828 = vmatpush1.msra.mxu0 %v819
        %829 = vmatprep.subr.mxu0 0.0
        %830 = vmatpush1.msra.mxu0 0.0
        %831 = vmatprep.subr.mxu0 0.0
        %832 = vmatpush1.msra.mxu0 0.0
        %833 = vmatprep.subr.mxu0 0.0
        %834 = vmatpush1.msra.mxu0 0.0
        %835 = vmatprep.subr.mxu0 0.0
        %836 = vmatpush1.msra.mxu0 0.0
        %837 = vmatprep.subr.mxu0 0.0
        %838 = vmatpush1.msra.mxu0 0.0
        %839 = vmatprep.subr.mxu0 0.0
        %840 = vmatpush1.msra.mxu0 0.0
        %841 = vmatprep.subr.mxu0 0.0
        %842 = vmatpush1.msra.mxu0 0.0
        %843 = vmatprep.subr.mxu0 0.0
        %844 = vmatpush1.msra.mxu0 0.0
        %845 = vmatprep.subr.mxu0 0.0
        %846 = vmatpush1.msra.mxu0 0.0
        %847 = vmatprep.subr.mxu0 0.0
        %848 = vmatpush1.msra.mxu0 0.0
        %849 = vmatprep.subr.mxu0 0.0
        %850 = vmatpush1.msra.mxu0 0.0
        %851 = vmatprep.subr.mxu0 0.0
        %852 = vmatpush1.msra.mxu0 0.0
        %853 = vmatprep.subr.mxu0 0.0
        %854 = vmatpush1.msra.mxu0 0.0
        %855 = vmatprep.subr.mxu0 0.0
        %856 = vmatpush1.msra.mxu0 0.0
        %857 = vmatprep.subr.mxu0 0.0
        %858 = vmatpush1.msra.mxu0 0.0
        %859 = vmatprep.subr.mxu0 0.0
        %860 = vmatpush1.msra.mxu0 0.0
        %861 = vmatprep.subr.mxu0 0.0
        %862 = vmatpush1.msra.mxu0 0.0
        %863 = vmatprep.subr.mxu0 0.0
        %864 = vmatpush1.msra.mxu0 0.0
        %865 = vmatprep.subr.mxu0 0.0
        %866 = vmatpush1.msra.mxu0 0.0
        %867 = vmatprep.subr.mxu0 0.0
        %868 = vmatpush1.msra.mxu0 0.0
        %869 = vmatprep.subr.mxu0 0.0
        %870 = vmatpush1.msra.mxu0 0.0
        %871 = vmatprep.subr.mxu0 0.0
        %872 = vmatpush1.msra.mxu0 0.0
        %873 = vmatprep.subr.mxu0 0.0
        %874 = vmatpush1.msra.mxu0 0.0
        %875 = vmatprep.subr.mxu0 0.0
        %876 = vmatpush1.msra.mxu0 0.0
        %877 = vmatprep.subr.mxu0 0.0
        %878 = vmatpush1.msra.mxu0 0.0
        %879 = vmatprep.subr.mxu0 0.0
        %880 = vmatpush1.msra.mxu0 0.0
        %881 = vmatprep.subr.mxu0 0.0
        %882 = vmatpush1.msra.mxu0 0.0
        %883 = vmatprep.subr.mxu0 0.0
        %884 = vmatpush1.msra.mxu0 0.0
        %885 = vmatprep.subr.mxu0 0.0
        %886 = vmatpush1.msra.mxu0 0.0
        %887 = vmatprep.subr.mxu0 0.0
        %888 = vmatpush1.msra.mxu0 0.0
        %889 = vmatprep.mubr.f32.mxu0 0.0
        %890 = vmatmul.mubr.f32.gmra.mrb[0].mxu0 %v823
        %v891 = vpop.f32.mrb[0].mxu0
        %v892 = vadd.f32 0.0, %v891
        %v893 = vpop.f32.mrb[0].mxu0
        %894 = vdwg.mxu0
        %vm895 = vcmask 516096
        %896 = vst.msk [vmem:[#allocation2] sm:$0x1] %vm895, %v892
        %897 = vset.pattern.permute.xlu0 1
        %898 = vperm.xlu0 %897, %v784
        %v899 = vpop.permute.xlu0 %898
        %901 = vset.pattern.permute.xlu0 1
        %902 = vperm.xlu0 %901, %v785
        %v903 = vpop.permute.xlu0 %902
        %v905 = vlaneseq
        %v906 = vshrl.u32 %v905, 7
        %v907 = vsub.s32 1, %v906
        %v908 = vrot.slane %v626, %v907
        %v909 = vmul.f32 %v899, %v908
        %v910 = vmul.f32 %v903, %v908
        %v911 = vmul.f32 %v738, %v818
        %v912 = vmul.f32 %v740, %v819
        %v913 = vadd.f32 %v911, %v909
        %v914 = vadd.f32 %v912, %v910
        %v915 = vrot.slane %v520, 1
        %916 = vrot.lane.b32.xlu0 %v915, 110
        %v917 = vpop.permute.xlu0 %916
        %v918 = vsel %vm822, %v917, 0
        %920 = vmatprep.subr.mxu0 0.0
        %921 = vmatpush1.msra.mxu0 %v913
        %922 = vmatprep.subr.mxu0 0.0
        %923 = vmatpush1.msra.mxu0 %v914
        %924 = vmatprep.subr.mxu0 0.0
        %925 = vmatpush1.msra.mxu0 0.0
        %926 = vmatprep.subr.mxu0 0.0
        %927 = vmatpush1.msra.mxu0 0.0
        %928 = vmatprep.subr.mxu0 0.0
        %929 = vmatpush1.msra.mxu0 0.0
        %930 = vmatprep.subr.mxu0 0.0
        %931 = vmatpush1.msra.mxu0 0.0
        %932 = vmatprep.subr.mxu0 0.0
        %933 = vmatpush1.msra.mxu0 0.0
        %934 = vmatprep.subr.mxu0 0.0
        %935 = vmatpush1.msra.mxu0 0.0
        %936 = vmatprep.subr.mxu0 0.0
        %937 = vmatpush1.msra.mxu0 0.0
        %938 = vmatprep.subr.mxu0 0.0
        %939 = vmatpush1.msra.mxu0 0.0
        %940 = vmatprep.subr.mxu0 0.0
        %941 = vmatpush1.msra.mxu0 0.0
        %942 = vmatprep.subr.mxu0 0.0
        %943 = vmatpush1.msra.mxu0 0.0
        %944 = vmatprep.subr.mxu0 0.0
        %945 = vmatpush1.msra.mxu0 0.0
        %946 = vmatprep.subr.mxu0 0.0
        %947 = vmatpush1.msra.mxu0 0.0
        %948 = vmatprep.subr.mxu0 0.0
        %949 = vmatpush1.msra.mxu0 0.0
        %950 = vmatprep.subr.mxu0 0.0
        %951 = vmatpush1.msra.mxu0 0.0
        %952 = vmatprep.subr.mxu0 0.0
        %953 = vmatpush1.msra.mxu0 0.0
        %954 = vmatprep.subr.mxu0 0.0
        %955 = vmatpush1.msra.mxu0 0.0
        %956 = vmatprep.subr.mxu0 0.0
        %957 = vmatpush1.msra.mxu0 0.0
        %958 = vmatprep.subr.mxu0 0.0
        %959 = vmatpush1.msra.mxu0 0.0
        %960 = vmatprep.subr.mxu0 0.0
        %961 = vmatpush1.msra.mxu0 0.0
        %962 = vmatprep.subr.mxu0 0.0
        %963 = vmatpush1.msra.mxu0 0.0
        %964 = vmatprep.subr.mxu0 0.0
        %965 = vmatpush1.msra.mxu0 0.0
        %966 = vmatprep.subr.mxu0 0.0
        %967 = vmatpush1.msra.mxu0 0.0
        %968 = vmatprep.subr.mxu0 0.0
        %969 = vmatpush1.msra.mxu0 0.0
        %970 = vmatprep.subr.mxu0 0.0
        %971 = vmatpush1.msra.mxu0 0.0
        %972 = vmatprep.subr.mxu0 0.0
        %973 = vmatpush1.msra.mxu0 0.0
        %974 = vmatprep.subr.mxu0 0.0
        %975 = vmatpush1.msra.mxu0 0.0
        %976 = vmatprep.subr.mxu0 0.0
        %977 = vmatpush1.msra.mxu0 0.0
        %978 = vmatprep.subr.mxu0 0.0
        %979 = vmatpush1.msra.mxu0 0.0
        %980 = vmatprep.subr.mxu0 0.0
        %981 = vmatpush1.msra.mxu0 0.0
        %982 = vmatprep.subr.mxu0 0.0
        %983 = vmatpush1.msra.mxu0 0.0
        %984 = vmatprep.mubr.f32.mxu0 0.0
        %985 = vmatmul.mubr.f32.gmra.mrb[0].mxu0 %v918
        %v986 = vpop.f32.mrb[0].mxu0
        %v987 = vadd.f32 0.0, %v986
        %v988 = vpop.f32.mrb[0].mxu0
        %989 = vdwg.mxu0
        %990 = vst.msk [vmem:[#allocation2 + $0x1] sm:$0x1] %vm895, %v987
        %991 = vset.pattern.permute.xlu0 2
        %992 = vperm.xlu0 %991, %v784
        %v993 = vpop.permute.xlu0 %992
        %995 = vset.pattern.permute.xlu0 2
        %996 = vperm.xlu0 %995, %v785
        %v997 = vpop.permute.xlu0 %996
        %v999 = vlaneseq
        %v1000 = vshrl.u32 %v999, 7
        %v1001 = vsub.s32 2, %v1000
        %v1002 = vrot.slane %v626, %v1001
        %v1003 = vmul.f32 %v993, %v1002
        %v1004 = vmul.f32 %v997, %v1002
        %v1005 = vmul.f32 %v742, %v913
        %v1006 = vmul.f32 %v744, %v914
        %v1007 = vadd.f32 %v1005, %v1003
        %v1008 = vadd.f32 %v1006, %v1004
        %v1009 = vrot.slane %v520, 2
        %1010 = vrot.lane.b32.xlu0 %v1009, 110
        %v1011 = vpop.permute.xlu0 %1010
        %v1012 = vsel %vm822, %v1011, 0
        %1014 = vmatprep.subr.mxu0 0.0
        %1015 = vmatpush1.msra.mxu0 %v1007
        %1016 = vmatprep.subr.mxu0 0.0
        %1017 = vmatpush1.msra.mxu0 %v1008
        %1018 = vmatprep.subr.mxu0 0.0
        %1019 = vmatpush1.msra.mxu0 0.0
        %1020 = vmatprep.subr.mxu0 0.0
        %1021 = vmatpush1.msra.mxu0 0.0
        %1022 = vmatprep.subr.mxu0 0.0
        %1023 = vmatpush1.msra.mxu0 0.0
        %1024 = vmatprep.subr.mxu0 0.0
        %1025 = vmatpush1.msra.mxu0 0.0
        %1026 = vmatprep.subr.mxu0 0.0
        %1027 = vmatpush1.msra.mxu0 0.0
        %1028 = vmatprep.subr.mxu0 0.0
        %1029 = vmatpush1.msra.mxu0 0.0
        %1030 = vmatprep.subr.mxu0 0.0
        %1031 = vmatpush1.msra.mxu0 0.0
        %1032 = vmatprep.subr.mxu0 0.0
        %1033 = vmatpush1.msra.mxu0 0.0
        %1034 = vmatprep.subr.mxu0 0.0
        %1035 = vmatpush1.msra.mxu0 0.0
        %1036 = vmatprep.subr.mxu0 0.0
        %1037 = vmatpush1.msra.mxu0 0.0
        %1038 = vmatprep.subr.mxu0 0.0
        %1039 = vmatpush1.msra.mxu0 0.0
        %1040 = vmatprep.subr.mxu0 0.0
        %1041 = vmatpush1.msra.mxu0 0.0
        %1042 = vmatprep.subr.mxu0 0.0
        %1043 = vmatpush1.msra.mxu0 0.0
        %1044 = vmatprep.subr.mxu0 0.0
        %1045 = vmatpush1.msra.mxu0 0.0
        %1046 = vmatprep.subr.mxu0 0.0
        %1047 = vmatpush1.msra.mxu0 0.0
        %1048 = vmatprep.subr.mxu0 0.0
        %1049 = vmatpush1.msra.mxu0 0.0
        %1050 = vmatprep.subr.mxu0 0.0
        %1051 = vmatpush1.msra.mxu0 0.0
        %1052 = vmatprep.subr.mxu0 0.0
        %1053 = vmatpush1.msra.mxu0 0.0
        %1054 = vmatprep.subr.mxu0 0.0
        %1055 = vmatpush1.msra.mxu0 0.0
        %1056 = vmatprep.subr.mxu0 0.0
        %1057 = vmatpush1.msra.mxu0 0.0
        %1058 = vmatprep.subr.mxu0 0.0
        %1059 = vmatpush1.msra.mxu0 0.0
        %1060 = vmatprep.subr.mxu0 0.0
        %1061 = vmatpush1.msra.mxu0 0.0
        %1062 = vmatprep.subr.mxu0 0.0
        %1063 = vmatpush1.msra.mxu0 0.0
        %1064 = vmatprep.subr.mxu0 0.0
        %1065 = vmatpush1.msra.mxu0 0.0
        %1066 = vmatprep.subr.mxu0 0.0
        %1067 = vmatpush1.msra.mxu0 0.0
        %1068 = vmatprep.subr.mxu0 0.0
        %1069 = vmatpush1.msra.mxu0 0.0
        %1070 = vmatprep.subr.mxu0 0.0
        %1071 = vmatpush1.msra.mxu0 0.0
        %1072 = vmatprep.subr.mxu0 0.0
        %1073 = vmatpush1.msra.mxu0 0.0
        %1074 = vmatprep.subr.mxu0 0.0
        %1075 = vmatpush1.msra.mxu0 0.0
        %1076 = vmatprep.subr.mxu0 0.0
        %1077 = vmatpush1.msra.mxu0 0.0
        %1078 = vmatprep.mubr.f32.mxu0 0.0
        %1079 = vmatmul.mubr.f32.gmra.mrb[0].mxu0 %v1012
        %v1080 = vpop.f32.mrb[0].mxu0
        %v1081 = vadd.f32 0.0, %v1080
        %v1082 = vpop.f32.mrb[0].mxu0
        %1083 = vdwg.mxu0
        %1084 = vst.msk [vmem:[#allocation2 + $0x2] sm:$0x1] %vm895, %v1081
        %1085 = vset.pattern.permute.xlu0 3
        %1086 = vperm.xlu0 %1085, %v784
        %v1087 = vpop.permute.xlu0 %1086
        %1089 = vset.pattern.permute.xlu0 3
        %1090 = vperm.xlu0 %1089, %v785
        %v1091 = vpop.permute.xlu0 %1090
        %v1093 = vlaneseq
        %v1094 = vshrl.u32 %v1093, 7
        %v1095 = vsub.s32 3, %v1094
        %v1096 = vrot.slane %v626, %v1095
        %v1097 = vmul.f32 %v1087, %v1096
        %v1098 = vmul.f32 %v1091, %v1096
        %v1099 = vmul.f32 %v746, %v1007
        %v1100 = vmul.f32 %v748, %v1008
        %v1101 = vadd.f32 %v1099, %v1097
        %v1102 = vadd.f32 %v1100, %v1098
        %v1103 = vrot.slane %v520, 3
        %1104 = vrot.lane.b32.xlu0 %v1103, 110
        %v1105 = vpop.permute.xlu0 %1104
        %v1106 = vsel %vm822, %v1105, 0
        %1108 = vmatprep.subr.mxu0 0.0
        %1109 = vmatpush1.msra.mxu0 %v1101
        %1110 = vmatprep.subr.mxu0 0.0
        %1111 = vmatpush1.msra.mxu0 %v1102
        %1112 = vmatprep.subr.mxu0 0.0
        %1113 = vmatpush1.msra.mxu0 0.0
        %1114 = vmatprep.subr.mxu0 0.0
        %1115 = vmatpush1.msra.mxu0 0.0
        %1116 = vmatprep.subr.mxu0 0.0
        %1117 = vmatpush1.msra.mxu0 0.0
        %1118 = vmatprep.subr.mxu0 0.0
        %1119 = vmatpush1.msra.mxu0 0.0
        %1120 = vmatprep.subr.mxu0 0.0
        %1121 = vmatpush1.msra.mxu0 0.0
        %1122 = vmatprep.subr.mxu0 0.0
        %1123 = vmatpush1.msra.mxu0 0.0
        %1124 = vmatprep.subr.mxu0 0.0
        %1125 = vmatpush1.msra.mxu0 0.0
        %1126 = vmatprep.subr.mxu0 0.0
        %1127 = vmatpush1.msra.mxu0 0.0
        %1128 = vmatprep.subr.mxu0 0.0
        %1129 = vmatpush1.msra.mxu0 0.0
        %1130 = vmatprep.subr.mxu0 0.0
        %1131 = vmatpush1.msra.mxu0 0.0
        %1132 = vmatprep.subr.mxu0 0.0
        %1133 = vmatpush1.msra.mxu0 0.0
        %1134 = vmatprep.subr.mxu0 0.0
        %1135 = vmatpush1.msra.mxu0 0.0
        %1136 = vmatprep.subr.mxu0 0.0
        %1137 = vmatpush1.msra.mxu0 0.0
        %1138 = vmatprep.subr.mxu0 0.0
        %1139 = vmatpush1.msra.mxu0 0.0
        %1140 = vmatprep.subr.mxu0 0.0
        %1141 = vmatpush1.msra.mxu0 0.0
        %1142 = vmatprep.subr.mxu0 0.0
        %1143 = vmatpush1.msra.mxu0 0.0
        %1144 = vmatprep.subr.mxu0 0.0
        %1145 = vmatpush1.msra.mxu0 0.0
        %1146 = vmatprep.subr.mxu0 0.0
        %1147 = vmatpush1.msra.mxu0 0.0
        %1148 = vmatprep.subr.mxu0 0.0
        %1149 = vmatpush1.msra.mxu0 0.0
        %1150 = vmatprep.subr.mxu0 0.0
        %1151 = vmatpush1.msra.mxu0 0.0
        %1152 = vmatprep.subr.mxu0 0.0
        %1153 = vmatpush1.msra.mxu0 0.0
        %1154 = vmatprep.subr.mxu0 0.0
        %1155 = vmatpush1.msra.mxu0 0.0
        %1156 = vmatprep.subr.mxu0 0.0
        %1157 = vmatpush1.msra.mxu0 0.0
        %1158 = vmatprep.subr.mxu0 0.0
        %1159 = vmatpush1.msra.mxu0 0.0
        %1160 = vmatprep.subr.mxu0 0.0
        %1161 = vmatpush1.msra.mxu0 0.0
        %1162 = vmatprep.subr.mxu0 0.0
        %1163 = vmatpush1.msra.mxu0 0.0
        %1164 = vmatprep.subr.mxu0 0.0
        %1165 = vmatpush1.msra.mxu0 0.0
        %1166 = vmatprep.subr.mxu0 0.0
        %1167 = vmatpush1.msra.mxu0 0.0
        %1168 = vmatprep.subr.mxu0 0.0
        %1169 = vmatpush1.msra.mxu0 0.0
        %1170 = vmatprep.subr.mxu0 0.0
        %1171 = vmatpush1.msra.mxu0 0.0
        %1172 = vmatprep.mubr.f32.mxu0 0.0
        %1173 = vmatmul.mubr.f32.gmra.mrb[0].mxu0 %v1106
        %v1174 = vpop.f32.mrb[0].mxu0
        %v1175 = vadd.f32 0.0, %v1174
        %v1176 = vpop.f32.mrb[0].mxu0
        %1177 = vdwg.mxu0
        %1178 = vst.msk [vmem:[#allocation2 + $0x3] sm:$0x1] %vm895, %v1175
        %1179 = vset.pattern.permute.xlu0 4
        %1180 = vperm.xlu0 %1179, %v784
        %v1181 = vpop.permute.xlu0 %1180
        %1183 = vset.pattern.permute.xlu0 4
        %1184 = vperm.xlu0 %1183, %v785
        %v1185 = vpop.permute.xlu0 %1184
        %v1187 = vlaneseq
        %v1188 = vshrl.u32 %v1187, 7
        %v1189 = vsub.s32 4, %v1188
        %v1190 = vrot.slane %v626, %v1189
        %v1191 = vmul.f32 %v1181, %v1190
        %v1192 = vmul.f32 %v1185, %v1190
        %v1193 = vmul.f32 %v750, %v1101
        %v1194 = vmul.f32 %v752, %v1102
        %v1195 = vadd.f32 %v1193, %v1191
        %v1196 = vadd.f32 %v1194, %v1192
        %v1197 = vrot.slane %v520, 4
        %1198 = vrot.lane.b32.xlu0 %v1197, 110
        %v1199 = vpop.permute.xlu0 %1198
        %v1200 = vsel %vm822, %v1199, 0
        %1202 = vmatprep.subr.mxu0 0.0
        %1203 = vmatpush1.msra.mxu0 %v1195
        %1204 = vmatprep.subr.mxu0 0.0
        %1205 = vmatpush1.msra.mxu0 %v1196
        %1206 = vmatprep.subr.mxu0 0.0
        %1207 = vmatpush1.msra.mxu0 0.0
        %1208 = vmatprep.subr.mxu0 0.0
        %1209 = vmatpush1.msra.mxu0 0.0
        %1210 = vmatprep.subr.mxu0 0.0
        %1211 = vmatpush1.msra.mxu0 0.0
        %1212 = vmatprep.subr.mxu0 0.0
        %1213 = vmatpush1.msra.mxu0 0.0
        %1214 = vmatprep.subr.mxu0 0.0
        %1215 = vmatpush1.msra.mxu0 0.0
        %1216 = vmatprep.subr.mxu0 0.0
        %1217 = vmatpush1.msra.mxu0 0.0
        %1218 = vmatprep.subr.mxu0 0.0
        %1219 = vmatpush1.msra.mxu0 0.0
        %1220 = vmatprep.subr.mxu0 0.0
        %1221 = vmatpush1.msra.mxu0 0.0
        %1222 = vmatprep.subr.mxu0 0.0
        %1223 = vmatpush1.msra.mxu0 0.0
        %1224 = vmatprep.subr.mxu0 0.0
        %1225 = vmatpush1.msra.mxu0 0.0
        %1226 = vmatprep.subr.mxu0 0.0
        %1227 = vmatpush1.msra.mxu0 0.0
        %1228 = vmatprep.subr.mxu0 0.0
        %1229 = vmatpush1.msra.mxu0 0.0
        %1230 = vmatprep.subr.mxu0 0.0
        %1231 = vmatpush1.msra.mxu0 0.0
        %1232 = vmatprep.subr.mxu0 0.0
        %1233 = vmatpush1.msra.mxu0 0.0
        %1234 = vmatprep.subr.mxu0 0.0
        %1235 = vmatpush1.msra.mxu0 0.0
        %1236 = vmatprep.subr.mxu0 0.0
        %1237 = vmatpush1.msra.mxu0 0.0
        %1238 = vmatprep.subr.mxu0 0.0
        %1239 = vmatpush1.msra.mxu0 0.0
        %1240 = vmatprep.subr.mxu0 0.0
        %1241 = vmatpush1.msra.mxu0 0.0
        %1242 = vmatprep.subr.mxu0 0.0
        %1243 = vmatpush1.msra.mxu0 0.0
        %1244 = vmatprep.subr.mxu0 0.0
        %1245 = vmatpush1.msra.mxu0 0.0
        %1246 = vmatprep.subr.mxu0 0.0
        %1247 = vmatpush1.msra.mxu0 0.0
        %1248 = vmatprep.subr.mxu0 0.0
        %1249 = vmatpush1.msra.mxu0 0.0
        %1250 = vmatprep.subr.mxu0 0.0
        %1251 = vmatpush1.msra.mxu0 0.0
        %1252 = vmatprep.subr.mxu0 0.0
        %1253 = vmatpush1.msra.mxu0 0.0
        %1254 = vmatprep.subr.mxu0 0.0
        %1255 = vmatpush1.msra.mxu0 0.0
        %1256 = vmatprep.subr.mxu0 0.0
        %1257 = vmatpush1.msra.mxu0 0.0
        %1258 = vmatprep.subr.mxu0 0.0
        %1259 = vmatpush1.msra.mxu0 0.0
        %1260 = vmatprep.subr.mxu0 0.0
        %1261 = vmatpush1.msra.mxu0 0.0
        %1262 = vmatprep.subr.mxu0 0.0
        %1263 = vmatpush1.msra.mxu0 0.0
        %1264 = vmatprep.subr.mxu0 0.0
        %1265 = vmatpush1.msra.mxu0 0.0
        %1266 = vmatprep.mubr.f32.mxu0 0.0
        %1267 = vmatmul.mubr.f32.gmra.mrb[0].mxu0 %v1200
        %v1268 = vpop.f32.mrb[0].mxu0
        %v1269 = vadd.f32 0.0, %v1268
        %v1270 = vpop.f32.mrb[0].mxu0
        %1271 = vdwg.mxu0
        %1272 = vst.msk [vmem:[#allocation2 + $0x4] sm:$0x1] %vm895, %v1269
        %1273 = vset.pattern.permute.xlu0 5
        %1274 = vperm.xlu0 %1273, %v784
        %v1275 = vpop.permute.xlu0 %1274
        %1277 = vset.pattern.permute.xlu0 5
        %1278 = vperm.xlu0 %1277, %v785
        %v1279 = vpop.permute.xlu0 %1278
        %v1281 = vlaneseq
        %v1282 = vshrl.u32 %v1281, 7
        %v1283 = vsub.s32 5, %v1282
        %v1284 = vrot.slane %v626, %v1283
        %v1285 = vmul.f32 %v1275, %v1284
        %v1286 = vmul.f32 %v1279, %v1284
        %v1287 = vmul.f32 %v754, %v1195
        %v1288 = vmul.f32 %v756, %v1196
        %v1289 = vadd.f32 %v1287, %v1285
        %v1290 = vadd.f32 %v1288, %v1286
        %v1291 = vrot.slane %v520, 5
        %1292 = vrot.lane.b32.xlu0 %v1291, 110
        %v1293 = vpop.permute.xlu0 %1292
        %v1294 = vsel %vm822, %v1293, 0
        %1296 = vmatprep.subr.mxu0 0.0
        %1297 = vmatpush1.msra.mxu0 %v1289
        %1298 = vmatprep.subr.mxu0 0.0
        %1299 = vmatpush1.msra.mxu0 %v1290
        %1300 = vmatprep.subr.mxu0 0.0
        %1301 = vmatpush1.msra.mxu0 0.0
        %1302 = vmatprep.subr.mxu0 0.0
        %1303 = vmatpush1.msra.mxu0 0.0
        %1304 = vmatprep.subr.mxu0 0.0
        %1305 = vmatpush1.msra.mxu0 0.0
        %1306 = vmatprep.subr.mxu0 0.0
        %1307 = vmatpush1.msra.mxu0 0.0
        %1308 = vmatprep.subr.mxu0 0.0
        %1309 = vmatpush1.msra.mxu0 0.0
        %1310 = vmatprep.subr.mxu0 0.0
        %1311 = vmatpush1.msra.mxu0 0.0
        %1312 = vmatprep.subr.mxu0 0.0
        %1313 = vmatpush1.msra.mxu0 0.0
        %1314 = vmatprep.subr.mxu0 0.0
        %1315 = vmatpush1.msra.mxu0 0.0
        %1316 = vmatprep.subr.mxu0 0.0
        %1317 = vmatpush1.msra.mxu0 0.0
        %1318 = vmatprep.subr.mxu0 0.0
        %1319 = vmatpush1.msra.mxu0 0.0
        %1320 = vmatprep.subr.mxu0 0.0
        %1321 = vmatpush1.msra.mxu0 0.0
        %1322 = vmatprep.subr.mxu0 0.0
        %1323 = vmatpush1.msra.mxu0 0.0
        %1324 = vmatprep.subr.mxu0 0.0
        %1325 = vmatpush1.msra.mxu0 0.0
        %1326 = vmatprep.subr.mxu0 0.0
        %1327 = vmatpush1.msra.mxu0 0.0
        %1328 = vmatprep.subr.mxu0 0.0
        %1329 = vmatpush1.msra.mxu0 0.0
        %1330 = vmatprep.subr.mxu0 0.0
        %1331 = vmatpush1.msra.mxu0 0.0
        %1332 = vmatprep.subr.mxu0 0.0
        %1333 = vmatpush1.msra.mxu0 0.0
        %1334 = vmatprep.subr.mxu0 0.0
        %1335 = vmatpush1.msra.mxu0 0.0
        %1336 = vmatprep.subr.mxu0 0.0
        %1337 = vmatpush1.msra.mxu0 0.0
        %1338 = vmatprep.subr.mxu0 0.0
        %1339 = vmatpush1.msra.mxu0 0.0
        %1340 = vmatprep.subr.mxu0 0.0
        %1341 = vmatpush1.msra.mxu0 0.0
        %1342 = vmatprep.subr.mxu0 0.0
        %1343 = vmatpush1.msra.mxu0 0.0
        %1344 = vmatprep.subr.mxu0 0.0
        %1345 = vmatpush1.msra.mxu0 0.0
        %1346 = vmatprep.subr.mxu0 0.0
        %1347 = vmatpush1.msra.mxu0 0.0
        %1348 = vmatprep.subr.mxu0 0.0
        %1349 = vmatpush1.msra.mxu0 0.0
        %1350 = vmatprep.subr.mxu0 0.0
        %1351 = vmatpush1.msra.mxu0 0.0
        %1352 = vmatprep.subr.mxu0 0.0
        %1353 = vmatpush1.msra.mxu0 0.0
        %1354 = vmatprep.subr.mxu0 0.0
        %1355 = vmatpush1.msra.mxu0 0.0
        %1356 = vmatprep.subr.mxu0 0.0
        %1357 = vmatpush1.msra.mxu0 0.0
        %1358 = vmatprep.subr.mxu0 0.0
        %1359 = vmatpush1.msra.mxu0 0.0
        %1360 = vmatprep.mubr.f32.mxu0 0.0
        %1361 = vmatmul.mubr.f32.gmra.mrb[0].mxu0 %v1294
        %v1362 = vpop.f32.mrb[0].mxu0
        %v1363 = vadd.f32 0.0, %v1362
        %v1364 = vpop.f32.mrb[0].mxu0
        %1365 = vdwg.mxu0
        %1366 = vst.msk [vmem:[#allocation2 + $0x5] sm:$0x1] %vm895, %v1363
        %1367 = vset.pattern.permute.xlu0 6
        %1368 = vperm.xlu0 %1367, %v784
        %v1369 = vpop.permute.xlu0 %1368
        %1371 = vset.pattern.permute.xlu0 6
        %1372 = vperm.xlu0 %1371, %v785
        %v1373 = vpop.permute.xlu0 %1372
        %v1375 = vlaneseq
        %v1376 = vshrl.u32 %v1375, 7
        %v1377 = vsub.s32 6, %v1376
        %v1378 = vrot.slane %v626, %v1377
        %v1379 = vmul.f32 %v1369, %v1378
        %v1380 = vmul.f32 %v1373, %v1378
        %v1381 = vmul.f32 %v758, %v1289
        %v1382 = vmul.f32 %v760, %v1290
        %v1383 = vadd.f32 %v1381, %v1379
        %v1384 = vadd.f32 %v1382, %v1380
        %v1385 = vrot.slane %v520, 6
        %1386 = vrot.lane.b32.xlu0 %v1385, 110
        %v1387 = vpop.permute.xlu0 %1386
        %v1388 = vsel %vm822, %v1387, 0
        %1390 = vmatprep.subr.mxu0 0.0
        %1391 = vmatpush1.msra.mxu0 %v1383
        %1392 = vmatprep.subr.mxu0 0.0
        %1393 = vmatpush1.msra.mxu0 %v1384
        %1394 = vmatprep.subr.mxu0 0.0
        %1395 = vmatpush1.msra.mxu0 0.0
        %1396 = vmatprep.subr.mxu0 0.0
        %1397 = vmatpush1.msra.mxu0 0.0
        %1398 = vmatprep.subr.mxu0 0.0
        %1399 = vmatpush1.msra.mxu0 0.0
        %1400 = vmatprep.subr.mxu0 0.0
        %1401 = vmatpush1.msra.mxu0 0.0
        %1402 = vmatprep.subr.mxu0 0.0
        %1403 = vmatpush1.msra.mxu0 0.0
        %1404 = vmatprep.subr.mxu0 0.0
        %1405 = vmatpush1.msra.mxu0 0.0
        %1406 = vmatprep.subr.mxu0 0.0
        %1407 = vmatpush1.msra.mxu0 0.0
        %1408 = vmatprep.subr.mxu0 0.0
        %1409 = vmatpush1.msra.mxu0 0.0
        %1410 = vmatprep.subr.mxu0 0.0
        %1411 = vmatpush1.msra.mxu0 0.0
        %1412 = vmatprep.subr.mxu0 0.0
        %1413 = vmatpush1.msra.mxu0 0.0
        %1414 = vmatprep.subr.mxu0 0.0
        %1415 = vmatpush1.msra.mxu0 0.0
        %1416 = vmatprep.subr.mxu0 0.0
        %1417 = vmatpush1.msra.mxu0 0.0
        %1418 = vmatprep.subr.mxu0 0.0
        %1419 = vmatpush1.msra.mxu0 0.0
        %1420 = vmatprep.subr.mxu0 0.0
        %1421 = vmatpush1.msra.mxu0 0.0
        %1422 = vmatprep.subr.mxu0 0.0
        %1423 = vmatpush1.msra.mxu0 0.0
        %1424 = vmatprep.subr.mxu0 0.0
        %1425 = vmatpush1.msra.mxu0 0.0
        %1426 = vmatprep.subr.mxu0 0.0
        %1427 = vmatpush1.msra.mxu0 0.0
        %1428 = vmatprep.subr.mxu0 0.0
        %1429 = vmatpush1.msra.mxu0 0.0
        %1430 = vmatprep.subr.mxu0 0.0
        %1431 = vmatpush1.msra.mxu0 0.0
        %1432 = vmatprep.subr.mxu0 0.0
        %1433 = vmatpush1.msra.mxu0 0.0
        %1434 = vmatprep.subr.mxu0 0.0
        %1435 = vmatpush1.msra.mxu0 0.0
        %1436 = vmatprep.subr.mxu0 0.0
        %1437 = vmatpush1.msra.mxu0 0.0
        %1438 = vmatprep.subr.mxu0 0.0
        %1439 = vmatpush1.msra.mxu0 0.0
        %1440 = vmatprep.subr.mxu0 0.0
        %1441 = vmatpush1.msra.mxu0 0.0
        %1442 = vmatprep.subr.mxu0 0.0
        %1443 = vmatpush1.msra.mxu0 0.0
        %1444 = vmatprep.subr.mxu0 0.0
        %1445 = vmatpush1.msra.mxu0 0.0
        %1446 = vmatprep.subr.mxu0 0.0
        %1447 = vmatpush1.msra.mxu0 0.0
        %1448 = vmatprep.subr.mxu0 0.0
        %1449 = vmatpush1.msra.mxu0 0.0
        %1450 = vmatprep.subr.mxu0 0.0
        %1451 = vmatpush1.msra.mxu0 0.0
        %1452 = vmatprep.subr.mxu0 0.0
        %1453 = vmatpush1.msra.mxu0 0.0
        %1454 = vmatprep.mubr.f32.mxu0 0.0
        %1455 = vmatmul.mubr.f32.gmra.mrb[0].mxu0 %v1388
        %v1456 = vpop.f32.mrb[0].mxu0
        %v1457 = vadd.f32 0.0, %v1456
        %v1458 = vpop.f32.mrb[0].mxu0
        %1459 = vdwg.mxu0
        %1460 = vst.msk [vmem:[#allocation2 + $0x6] sm:$0x1] %vm895, %v1457
        %1461 = vset.pattern.permute.xlu0 7
        %1462 = vperm.xlu0 %1461, %v784
        %v1463 = vpop.permute.xlu0 %1462
        %1465 = vset.pattern.permute.xlu0 7
        %1466 = vperm.xlu0 %1465, %v785
        %v1467 = vpop.permute.xlu0 %1466
        %v1469 = vlaneseq
        %v1470 = vshrl.u32 %v1469, 7
        %v1471 = vsub.s32 7, %v1470
        %v1472 = vrot.slane %v626, %v1471
        %v1473 = vmul.f32 %v1463, %v1472
        %v1474 = vmul.f32 %v1467, %v1472
        %v1475 = vmul.f32 %v762, %v1383
        %v1476 = vmul.f32 %v764, %v1384
        %v1477 = vadd.f32 %v1475, %v1473
        %v1478 = vadd.f32 %v1476, %v1474
        %v1479 = vrot.slane %v520, 7
        %1480 = vrot.lane.b32.xlu0 %v1479, 110
        %v1481 = vpop.permute.xlu0 %1480
        %v1482 = vsel %vm822, %v1481, 0
        %1484 = vmatprep.subr.mxu0 0.0
        %1485 = vmatpush1.msra.mxu0 %v1477
        %1486 = vmatprep.subr.mxu0 0.0
        %1487 = vmatpush1.msra.mxu0 %v1478
        %1488 = vmatprep.subr.mxu0 0.0
        %1489 = vmatpush1.msra.mxu0 0.0
        %1490 = vmatprep.subr.mxu0 0.0
        %1491 = vmatpush1.msra.mxu0 0.0
        %1492 = vmatprep.subr.mxu0 0.0
        %1493 = vmatpush1.msra.mxu0 0.0
        %1494 = vmatprep.subr.mxu0 0.0
        %1495 = vmatpush1.msra.mxu0 0.0
        %1496 = vmatprep.subr.mxu0 0.0
        %1497 = vmatpush1.msra.mxu0 0.0
        %1498 = vmatprep.subr.mxu0 0.0
        %1499 = vmatpush1.msra.mxu0 0.0
        %1500 = vmatprep.subr.mxu0 0.0
        %1501 = vmatpush1.msra.mxu0 0.0
        %1502 = vmatprep.subr.mxu0 0.0
        %1503 = vmatpush1.msra.mxu0 0.0
        %1504 = vmatprep.subr.mxu0 0.0
        %1505 = vmatpush1.msra.mxu0 0.0
        %1506 = vmatprep.subr.mxu0 0.0
        %1507 = vmatpush1.msra.mxu0 0.0
        %1508 = vmatprep.subr.mxu0 0.0
        %1509 = vmatpush1.msra.mxu0 0.0
        %1510 = vmatprep.subr.mxu0 0.0
        %1511 = vmatpush1.msra.mxu0 0.0
        %1512 = vmatprep.subr.mxu0 0.0
        %1513 = vmatpush1.msra.mxu0 0.0
        %1514 = vmatprep.subr.mxu0 0.0
        %1515 = vmatpush1.msra.mxu0 0.0
        %1516 = vmatprep.subr.mxu0 0.0
        %1517 = vmatpush1.msra.mxu0 0.0
        %1518 = vmatprep.subr.mxu0 0.0
        %1519 = vmatpush1.msra.mxu0 0.0
        %1520 = vmatprep.subr.mxu0 0.0
        %1521 = vmatpush1.msra.mxu0 0.0
        %1522 = vmatprep.subr.mxu0 0.0
        %1523 = vmatpush1.msra.mxu0 0.0
        %1524 = vmatprep.subr.mxu0 0.0
        %1525 = vmatpush1.msra.mxu0 0.0
        %1526 = vmatprep.subr.mxu0 0.0
        %1527 = vmatpush1.msra.mxu0 0.0
        %1528 = vmatprep.subr.mxu0 0.0
        %1529 = vmatpush1.msra.mxu0 0.0
        %1530 = vmatprep.subr.mxu0 0.0
        %1531 = vmatpush1.msra.mxu0 0.0
        %1532 = vmatprep.subr.mxu0 0.0
        %1533 = vmatpush1.msra.mxu0 0.0
        %1534 = vmatprep.subr.mxu0 0.0
        %1535 = vmatpush1.msra.mxu0 0.0
        %1536 = vmatprep.subr.mxu0 0.0
        %1537 = vmatpush1.msra.mxu0 0.0
        %1538 = vmatprep.subr.mxu0 0.0
        %1539 = vmatpush1.msra.mxu0 0.0
        %1540 = vmatprep.subr.mxu0 0.0
        %1541 = vmatpush1.msra.mxu0 0.0
        %1542 = vmatprep.subr.mxu0 0.0
        %1543 = vmatpush1.msra.mxu0 0.0
        %1544 = vmatprep.subr.mxu0 0.0
        %1545 = vmatpush1.msra.mxu0 0.0
        %1546 = vmatprep.subr.mxu0 0.0
        %1547 = vmatpush1.msra.mxu0 0.0
        %1548 = vmatprep.mubr.f32.mxu0 0.0
        %1549 = vmatmul.mubr.f32.gmra.mrb[0].mxu0 %v1482
        %v1550 = vpop.f32.mrb[0].mxu0
        %v1551 = vadd.f32 0.0, %v1550
        %v1552 = vpop.f32.mrb[0].mxu0
        %1553 = vdwg.mxu0
        %1554 = vst.msk [vmem:[#allocation2 + $0x7] sm:$0x1] %vm895, %v1551
        %v1555 = vld [vmem:[#allocation2] sm:$0xff]
        %v1556 = vmul.f32 %v625, %v356
        %v1557 = vadd.f32 %v1555, %v1556
        %v1558 = vsub.f32 0.0, %v294
        %v1559 = vmul.f32 %v1558, 1.442695
        %v1560 = vpow.pop %v1559
        %v1561 = vadd.f32 %v1560, 1.0
        %v1562 = vrcp.pop %v1561
        %v1563 = vmul.f32 1.0, %v1562
        %v1564 = vmul.f32 %v294, %v1563
        %1566 = vrot.lane.b32.xlu0 %v1564, 64
        %v1567 = vpop.permute.xlu0 %1566
        %v1569 = vmul.f32 %v1557, %v1567
        %v1570 = vld [vmem:[#allocation3 + $0x140] sm:$0xff]
        %v1571 = vld [vmem:[#allocation3 + $0x150] sm:$0xff]
        %v1572 = vld [vmem:[#allocation3 + $0x160] sm:$0xff]
        %v1573 = vld [vmem:[#allocation3 + $0x170] sm:$0xff]
        %v1574 = vld [vmem:[#allocation3 + $0x180] sm:$0xff]
        %v1575 = vld [vmem:[#allocation3 + $0x190] sm:$0xff]
        %v1576 = vld [vmem:[#allocation3 + $0x1a0] sm:$0xff]
        %v1577 = vld [vmem:[#allocation3 + $0x1b0] sm:$0xff]
        %v1579 = vsel %vm365, %v1569, 0
        %1581 = vmatprep.subr.mxu0 0.0
        %1582 = vmatpush1.msra.mxu0 %v1570
        %1583 = vmatprep.subr.mxu0 0.0
        %1584 = vmatpush1.msra.mxu0 %v1571
        %1585 = vmatprep.subr.mxu0 0.0
        %1586 = vmatpush1.msra.mxu0 %v1572
        %1587 = vmatprep.subr.mxu0 0.0
        %1588 = vmatpush1.msra.mxu0 %v1573
        %1589 = vmatprep.subr.mxu0 0.0
        %1590 = vmatpush1.msra.mxu0 %v1574
        %1591 = vmatprep.subr.mxu0 0.0
        %1592 = vmatpush1.msra.mxu0 %v1575
        %1593 = vmatprep.subr.mxu0 0.0
        %1594 = vmatpush1.msra.mxu0 %v1576
        %1595 = vmatprep.subr.mxu0 0.0
        %1596 = vmatpush1.msra.mxu0 %v1577
        %1597 = vmatprep.subr.mxu0 0.0
        %1598 = vmatpush1.msra.mxu0 0.0
        %1599 = vmatprep.subr.mxu0 0.0
        %1600 = vmatpush1.msra.mxu0 0.0
        %1601 = vmatprep.subr.mxu0 0.0
        %1602 = vmatpush1.msra.mxu0 0.0
        %1603 = vmatprep.subr.mxu0 0.0
        %1604 = vmatpush1.msra.mxu0 0.0
        %1605 = vmatprep.subr.mxu0 0.0
        %1606 = vmatpush1.msra.mxu0 0.0
        %1607 = vmatprep.subr.mxu0 0.0
        %1608 = vmatpush1.msra.mxu0 0.0
        %1609 = vmatprep.subr.mxu0 0.0
        %1610 = vmatpush1.msra.mxu0 0.0
        %1611 = vmatprep.subr.mxu0 0.0
        %1612 = vmatpush1.msra.mxu0 0.0
        %1613 = vmatprep.subr.mxu0 0.0
        %1614 = vmatpush1.msra.mxu0 0.0
        %1615 = vmatprep.subr.mxu0 0.0
        %1616 = vmatpush1.msra.mxu0 0.0
        %1617 = vmatprep.subr.mxu0 0.0
        %1618 = vmatpush1.msra.mxu0 0.0
        %1619 = vmatprep.subr.mxu0 0.0
        %1620 = vmatpush1.msra.mxu0 0.0
        %1621 = vmatprep.subr.mxu0 0.0
        %1622 = vmatpush1.msra.mxu0 0.0
        %1623 = vmatprep.subr.mxu0 0.0
        %1624 = vmatpush1.msra.mxu0 0.0
        %1625 = vmatprep.subr.mxu0 0.0
        %1626 = vmatpush1.msra.mxu0 0.0
        %1627 = vmatprep.subr.mxu0 0.0
        %1628 = vmatpush1.msra.mxu0 0.0
        %1629 = vmatprep.subr.mxu0 0.0
        %1630 = vmatpush1.msra.mxu0 0.0
        %1631 = vmatprep.subr.mxu0 0.0
        %1632 = vmatpush1.msra.mxu0 0.0
        %1633 = vmatprep.subr.mxu0 0.0
        %1634 = vmatpush1.msra.mxu0 0.0
        %1635 = vmatprep.subr.mxu0 0.0
        %1636 = vmatpush1.msra.mxu0 0.0
        %1637 = vmatprep.subr.mxu0 0.0
        %1638 = vmatpush1.msra.mxu0 0.0
        %1639 = vmatprep.subr.mxu0 0.0
        %1640 = vmatpush1.msra.mxu0 0.0
        %1641 = vmatprep.subr.mxu0 0.0
        %1642 = vmatpush1.msra.mxu0 0.0
        %1643 = vmatprep.subr.mxu0 0.0
        %1644 = vmatpush1.msra.mxu0 0.0
        %1645 = vmatprep.mubr.f32.mxu0 0.0
        %1646 = vmatmul.mubr.f32.gmra.mrb[0].mxu0 %v1579
        %v1647 = vpop.f32.mrb[0].mxu0
        %v1648 = vadd.f32 0.0, %v1647
        %v1649 = vpop.f32.mrb[0].mxu0
        %1650 = vdwg.mxu0
        %v1651 = vmul.f32 %v286, %v1648
        %v1652 = vmul.f32 %v291, %v1648
        %1654 = vrot.lane.b32.xlu0 %v1652, 96
        %v1655 = vpop.permute.xlu0 %1654
        %v1657 = vadd.f32 %v1651, %v1655
        %1658 = vst.msk [vmem:[%s189] sm:$0xff] %vm208, %v1657
        %s1659 = sand.u32 %s99, 1
        %s1660 = scalar_lea.sflag [#allocation5], %s1659
        %s1661 = sand.u32 %s99, 1
        %s1662 = smul.addr %s1661, 8
        %s1663 = scalar_lea.vmem [#allocation6], %s1662
        // Predicated region
        $region37: #{tpu_custom_call.1} parent=31 // pred_check
          %p1664 = pneg %p109
        $region38: #{tpu_custom_call.1} parent=31 // pred_check_branch
          %1666 = sbr.rel (%p1664) target = $region40
        $region39: #{tpu_custom_call.1} parent=31 // pred_region
          %s1668 = ssub.s32 128, 128
          %1669 = vsyncadd %s1660, %s1668
          %s1670 = smul.addr %s18, 128
          %s1671 = scalar_lea.hbm %s3, %s1670
          %s1673 = sshll.u32 %s1663, 4
          %s1674 = int_to_ptr.vmem [resolvable:$true] %s1673
          %1676 = dma.vmem_to_hbm [thread:$0]  %s1674, 128, %s1671, %s1660
        $region40: #{tpu_custom_call.1} parent=31 // pred_fallthru
          _
      $region32: #{tpu_custom_call.1} parent=5 // pred_fallthru
        _
      %p1677 = scmp.le.s32.totalorder 2, %s13
      // Predicated region
      $region41: #{tpu_custom_call.1} parent=5 // pred_check
        %p1678 = pneg %p1677
      $region42: #{tpu_custom_call.1} parent=5 // pred_check_branch
        %1680 = sbr.rel (%p1678) target = $region44
      $region43: #{tpu_custom_call.1} parent=5 // pred_region
        %s1681 = ssub.s32 %s13, 2
        // Predicated region
        $region45: #{tpu_custom_call.1} parent=43 // pred_check
          %p1682 = pneg %p115
        $region46: #{tpu_custom_call.1} parent=43 // pred_check_branch
          %1684 = sbr.rel (%p1682) target = $region48
        $region47: #{tpu_custom_call.1} parent=43 // pred_region
          %s1685 = sand.u32 %s100, 1
          %s1686 = scalar_lea.sflag [#allocation5], %s1685
          %s1687 = sand.u32 %s100, 1
          %s1688 = smul.addr %s1687, 8
          %s1689 = scalar_lea.vmem [#allocation6], %s1688
          %1690 = dma.done %s1686, 128
        $region48: #{tpu_custom_call.1} parent=43 // pred_fallthru
          _
      $region44: #{tpu_custom_call.1} parent=5 // pred_fallthru
        _
    $region6: #{tpu_custom_call.1} parent=1 // loop_footer
      %s17 = sadd.s32 1, %s13
    $region7: #{tpu_custom_call.1} parent=1 // loop_footer_branch
      %12 = sbr.rel target = $region3
    $region8: #{tpu_custom_call.1} parent=1 // loop_exit
      _
    %1691 = vsyncpa [#allocation4], 1
    %s1692 = scalar_lea.sflag [#allocation4], 1
    %1693 = vsyncpa %s1692, 1
    %1694 = vsyncpa [#allocation5], 1
    %s1695 = scalar_lea.sflag [#allocation5], 1
    %1696 = vsyncpa %s1695, 1

</llo_original>
